<compile_context>
chip_gen: v6e
topology: v6e:2x2x1
jax: 0.10.0
libtpu: 0.0.40
codegen_flags: <defaults>
</compile_context>

<pallas_src>
import functools

import jax
import jax.numpy as jnp
from jax import lax
from jax.experimental import pallas as pl
from jax.experimental.pallas import tpu as pltpu


def _conv_stats_kernel(x_ref, wct_ref, bc_ref, y_ref, ssum_ref, ssq_ref, xpad,
                       *, H, W, Cin, k, p):
    """Fused depthwise+pointwise conv for one image; emits y^T and BN moments."""
    Hp, Wp = H + 2 * p, W + 2 * p

    # 'same' zero-padding done in VMEM (avoids an extra HBM pass over x).
    xpad[...] = jnp.zeros((Hp, Wp, Cin), jnp.float32)
    xpad[p:p + H, p:p + W, :] = x_ref[0]

    # In-kernel im2col: the 9 shifted slabs concatenated -> K = k*k*Cin.
    slabs = []
    for dh in range(k):
        for dw in range(k):
            slabs.append(xpad[dh:dh + H, dw:dw + W, :].reshape(H * W, Cin))
    a = jnp.concatenate(slabs, axis=1)                       # (H*W, k*k*Cin)

    # Single MXU matmul, computed directly in channels-major orientation so the
    # store below is lane-dense (minor dim = H*W, a multiple of 128).
    # NOTE: operands kept f32 for exact parity with the f32 reference; on
    # v6e/v7x they could be cast to bf16 (f32 accumulate) to halve DMA bytes.
    yt = lax.dot_general(wct_ref[...], a, (((1,), (1,)), ((), ())),
                         preferred_element_type=jnp.float32)
    yt = yt + bc_ref[...]                                    # (Cout, H*W)

    y_ref[0] = yt
    # Per-tile first/second moments for the two-pass (gridded) BatchNorm.
    ssum_ref[0] = jnp.sum(yt, axis=1, keepdims=True)         # (Cout, 1)
    ssq_ref[0] = jnp.sum(yt * yt, axis=1, keepdims=True)     # (Cout, 1)


def _bn_elu_kernel(y_ref, scale_ref, shift_ref, o_ref):
    """Apply the folded BatchNorm affine + ELU on the (Cout, H*W) layout."""
    yh = y_ref[0] * scale_ref[...] + shift_ref[...]
    t = jnp.minimum(yh, 0.0)
    # expm1(t) == tanh(t/2) * (exp(t) + 1): full f32 accuracy near 0 (matches
    # the reference's expm1) using only exp/tanh, both EUP ops with guaranteed
    # Mosaic lowering.
    neg = jnp.tanh(0.5 * t) * (jnp.exp(t) + 1.0)
    o_ref[0] = jnp.where(yh > 0, yh, neg)


def depthwise_separable_conv(x_nchw, wd, bd, wp, bp, gamma, beta, *, eps=1e-5):
    """x_nchw: (N, Cin, H, W); wd: (Cin, 1, k, k); wp: (Cout, Cin, 1, 1)."""
    N, Cin, H, W = x_nchw.shape
    Cout = wp.shape[0]
    k = wd.shape[-1]
    assert k % 2 == 1, "'same' padding math below assumes an odd kernel size"
    p = k // 2
    HW = H * W

    x_nhwc = jnp.transpose(x_nchw, (0, 2, 3, 1)).astype(jnp.float32)

    # Fold the depthwise conv into the pointwise conv (both are linear):
    #   W_comb_T[o, tap*Cin + c] = wp[o, c] * wd[c, dh, dw],  tap = dh*k + dw
    #   b_comb[o]               = sum_c wp[o, c] * bd[c] + bp[o]
    wp2 = wp[:, :, 0, 0].astype(jnp.float32)                          # (Cout, Cin)
    wd_taps = jnp.transpose(wd[:, 0, :, :].astype(jnp.float32),
                            (1, 2, 0)).reshape(k * k, Cin)            # (k*k, Cin)
    w_comb_t = jnp.transpose(wp2[None, :, :] * wd_taps[:, None, :],
                             (1, 0, 2)).reshape(Cout, k * k * Cin)    # (Cout, k*k*Cin)
    b_comb = (wp2 @ bd.astype(jnp.float32)
              + bp.astype(jnp.float32)).reshape(Cout, 1)              # (Cout, 1)

    kern1 = functools.partial(_conv_stats_kernel, H=H, W=W, Cin=Cin, k=k, p=p)
    y, ssum, ssq = pl.pallas_call(
        kern1,
        grid=(N,),
        in_specs=[
            pl.BlockSpec((1, H, W, Cin), lambda n: (n, 0, 0, 0)),
            pl.BlockSpec((Cout, k * k * Cin), lambda n: (0, 0)),
            pl.BlockSpec((Cout, 1), lambda n: (0, 0)),
        ],
        out_specs=(
            pl.BlockSpec((1, Cout, HW), lambda n: (n, 0, 0)),
            pl.BlockSpec((1, Cout, 1), lambda n: (n, 0, 0)),
            pl.BlockSpec((1, Cout, 1), lambda n: (n, 0, 0)),
        ),
        out_shape=(
            jax.ShapeDtypeStruct((N, Cout, HW), jnp.float32),
            jax.ShapeDtypeStruct((N, Cout, 1), jnp.float32),
            jax.ShapeDtypeStruct((N, Cout, 1), jnp.float32),
        ),
        scratch_shapes=[pltpu.VMEM((H + 2 * p, W + 2 * p, Cin), jnp.float32)],
        compiler_params=pltpu.CompilerParams(
            dimension_semantics=("parallel",)),
    )(x_nhwc, w_comb_t, b_comb)

    # Tiny host-side reduction across tiles: batch mean / biased variance in a
    # single pass over y (f32 accumulation, guarded against cancellation), then
    # gamma/beta folded into one per-channel scale/shift.
    cnt = jnp.float32(N * HW)
    mean = jnp.sum(ssum[:, :, 0], axis=0) / cnt                       # (Cout,)
    var = jnp.maximum(jnp.sum(ssq[:, :, 0], axis=0) / cnt - mean * mean, 0.0)
    scale = (gamma.astype(jnp.float32) * lax.rsqrt(var + eps)).reshape(Cout, 1)
    shift = beta.astype(jnp.float32).reshape(Cout, 1) - mean.reshape(Cout, 1) * scale

    out = pl.pallas_call(
        _bn_elu_kernel,
        grid=(N,),
        in_specs=[
            pl.BlockSpec((1, Cout, HW), lambda n: (n, 0, 0)),
            pl.BlockSpec((Cout, 1), lambda n: (0, 0)),
            pl.BlockSpec((Cout, 1), lambda n: (0, 0)),
        ],
        out_specs=pl.BlockSpec((1, Cout, HW), lambda n: (n, 0, 0)),
        out_shape=jax.ShapeDtypeStruct((N, Cout, HW), jnp.float32),
        compiler_params=pltpu.CompilerParams(
            dimension_semantics=("parallel",)),
    )(y, scale, shift)

    # (N, Cout, H*W) is already channel-major -> just reshape back to NCHW.
    return out.reshape(N, Cout, H, W)


def _reference(x_nchw, wd, bd, wp, bp, gamma, beta, eps=1e-5):
    """Pure-JAX reference (mirrors the PyTorch forward in training mode)."""
    Cin = x_nchw.shape[1]
    dn = ('NCHW', 'OIHW', 'NCHW')
    y = lax.conv_general_dilated(x_nchw, wd, (1, 1), 'SAME',
                                 feature_group_count=Cin, dimension_numbers=dn)
    y = y + bd[None, :, None, None]
    y = lax.conv_general_dilated(y, wp, (1, 1), 'SAME', dimension_numbers=dn)
    y = y + bp[None, :, None, None]
    mean = y.mean(axis=(0, 2, 3))
    var = ((y - mean[None, :, None, None]) ** 2).mean(axis=(0, 2, 3))
    yh = (y - mean[None, :, None, None]) * lax.rsqrt(var + eps)[None, :, None, None]
    yh = yh * gamma[None, :, None, None] + beta[None, :, None, None]
    return jnp.where(yh > 0, yh, jnp.expm1(yh))


if __name__ == "__main__":
    N, Cin, Cout, H, W, k = 2, 4, 8, 16, 16, 3

    key = jax.random.PRNGKey(0)
    kx, kwd, kbd, kwp, kbp, kg, kb = jax.random.split(key, 7)

    x = jax.random.normal(kx, (N, Cin, H, W), jnp.float32)
    wd = jax.random.normal(kwd, (Cin, 1, k, k), jnp.float32) * 0.2      # depthwise weight
    bd = jax.random.normal(kbd, (Cin,), jnp.float32) * 0.1              # depthwise bias
    wp = jax.random.normal(kwp, (Cout, Cin, 1, 1), jnp.float32) * 0.2   # pointwise weight
    bp = jax.random.normal(kbp, (Cout,), jnp.float32) * 0.1             # pointwise bias
    gamma = 1.0 + 0.1 * jax.random.normal(kg, (Cout,), jnp.float32)     # BN weight
    beta = 0.1 * jax.random.normal(kb, (Cout,), jnp.float32)            # BN bias

    out = depthwise_separable_conv(x, wd, bd, wp, bp, gamma, beta)
    out = jax.block_until_ready(out)

    ref = jax.block_until_ready(_reference(x, wd, bd, wp, bp, gamma, beta))
    assert out.shape == (N, Cout, H, W)
    assert jnp.allclose(out, ref, atol=1e-4, rtol=1e-4), \
        f"max abs err {jnp.max(jnp.abs(out - ref))}"

    print("KERNEL_OK")
</pallas_src>

<mosaic_0001>
module attributes {stable_mosaic.version = 11 : i64} {
  func.func @_conv_stats_kernel(%arg0: i32, %arg1: memref<1x16x16x4xf32, #tpu.memory_space<vmem>>, %arg2: memref<8x36xf32, #tpu.memory_space<vmem>>, %arg3: memref<8x1xf32, #tpu.memory_space<vmem>>, %arg4: memref<1x8x256xf32, #tpu.memory_space<vmem>>, %arg5: memref<1x8x1xf32, #tpu.memory_space<vmem>>, %arg6: memref<1x8x1xf32, #tpu.memory_space<vmem>>, %arg7: memref<18x18x4xf32, #tpu.memory_space<vmem>>) attributes {dimension_semantics = [#tpu.dimension_semantics<parallel>], iteration_bounds = array<i64: 2>, scalar_prefetch = 0 : i64, scratch_operands = 1 : i64, tpu.core_type = #tpu.core_type<tc>, window_params = [{transform_indices = @transform_0, window_bounds = array<i64: 1, 16, 16, 4>}, {pipeline_mode = #tpu.pipeline_mode<synchronous>, transform_indices = @transform_1, window_bounds = array<i64: 8, 36>}, {pipeline_mode = #tpu.pipeline_mode<synchronous>, transform_indices = @transform_2, window_bounds = array<i64: 8, 1>}, {transform_indices = @transform_3, window_bounds = array<i64: 1, 8, 256>}, {transform_indices = @transform_4, window_bounds = array<i64: 1, 8, 1>}, {transform_indices = @transform_5, window_bounds = array<i64: 1, 8, 1>}]} {
    %cst = arith.constant 0.000000e+00 : f32
    %0 = vector.broadcast %cst : f32 to vector<18x18x4xf32>
    %c0 = arith.constant 0 : index
    %c0_0 = arith.constant 0 : index
    %c0_1 = arith.constant 0 : index
    %1 = vector.load %arg7[%c0, %c0_0, %c0_1] : memref<18x18x4xf32, #tpu.memory_space<vmem>>, vector<18x18x4xf32>
    tpu.vector_store %arg7[%c0, %c0_0, %c0_1], %0 {strides = array<i32>} : memref<18x18x4xf32, #tpu.memory_space<vmem>>, vector<18x18x4xf32>,
    %c0_2 = arith.constant 0 : index
    %c0_3 = arith.constant 0 : index
    %c0_4 = arith.constant 0 : index
    %c0_5 = arith.constant 0 : index
    %2 = vector.load %arg1[%c0_2, %c0_3, %c0_4, %c0_5] : memref<1x16x16x4xf32, #tpu.memory_space<vmem>>, vector<1x16x16x4xf32>
    %3 = vector.shape_cast %2 : vector<1x16x16x4xf32> to vector<16x16x4xf32>
    %c1 = arith.constant 1 : index
    %c1_6 = arith.constant 1 : index
    %c0_7 = arith.constant 0 : index
    %4 = vector.load %arg7[%c1, %c1_6, %c0_7] : memref<18x18x4xf32, #tpu.memory_space<vmem>>, vector<16x16x4xf32>
    tpu.vector_store %arg7[%c1, %c1_6, %c0_7], %3 {strides = array<i32>} : memref<18x18x4xf32, #tpu.memory_space<vmem>>, vector<16x16x4xf32>,
    %c0_8 = arith.constant 0 : index
    %c0_9 = arith.constant 0 : index
    %c0_10 = arith.constant 0 : index
    %5 = vector.load %arg7[%c0_8, %c0_9, %c0_10] : memref<18x18x4xf32, #tpu.memory_space<vmem>>, vector<16x16x4xf32>
    %6 = vector.shape_cast %5 : vector<16x16x4xf32> to vector<256x4xf32>
    %c0_11 = arith.constant 0 : index
    %c1_12 = arith.constant 1 : index
    %c0_13 = arith.constant 0 : index
    %7 = vector.load %arg7[%c0_11, %c1_12, %c0_13] : memref<18x18x4xf32, #tpu.memory_space<vmem>>, vector<16x16x4xf32>
    %8 = vector.shape_cast %7 : vector<16x16x4xf32> to vector<256x4xf32>
    %c0_14 = arith.constant 0 : index
    %c2 = arith.constant 2 : index
    %c0_15 = arith.constant 0 : index
    %9 = vector.load %arg7[%c0_14, %c2, %c0_15] : memref<18x18x4xf32, #tpu.memory_space<vmem>>, vector<16x16x4xf32>
    %10 = vector.shape_cast %9 : vector<16x16x4xf32> to vector<256x4xf32>
    %c1_16 = arith.constant 1 : index
    %c0_17 = arith.constant 0 : index
    %c0_18 = arith.constant 0 : index
    %11 = vector.load %arg7[%c1_16, %c0_17, %c0_18] : memref<18x18x4xf32, #tpu.memory_space<vmem>>, vector<16x16x4xf32>
    %12 = vector.shape_cast %11 : vector<16x16x4xf32> to vector<256x4xf32>
    %c1_19 = arith.constant 1 : index
    %c1_20 = arith.constant 1 : index
    %c0_21 = arith.constant 0 : index
    %13 = vector.load %arg7[%c1_19, %c1_20, %c0_21] : memref<18x18x4xf32, #tpu.memory_space<vmem>>, vector<16x16x4xf32>
    %14 = vector.shape_cast %13 : vector<16x16x4xf32> to vector<256x4xf32>
    %c1_22 = arith.constant 1 : index
    %c2_23 = arith.constant 2 : index
    %c0_24 = arith.constant 0 : index
    %15 = vector.load %arg7[%c1_22, %c2_23, %c0_24] : memref<18x18x4xf32, #tpu.memory_space<vmem>>, vector<16x16x4xf32>
    %16 = vector.shape_cast %15 : vector<16x16x4xf32> to vector<256x4xf32>
    %c2_25 = arith.constant 2 : index
    %c0_26 = arith.constant 0 : index
    %c0_27 = arith.constant 0 : index
    %17 = vector.load %arg7[%c2_25, %c0_26, %c0_27] : memref<18x18x4xf32, #tpu.memory_space<vmem>>, vector<16x16x4xf32>
    %18 = vector.shape_cast %17 : vector<16x16x4xf32> to vector<256x4xf32>
    %c2_28 = arith.constant 2 : index
    %c1_29 = arith.constant 1 : index
    %c0_30 = arith.constant 0 : index
    %19 = vector.load %arg7[%c2_28, %c1_29, %c0_30] : memref<18x18x4xf32, #tpu.memory_space<vmem>>, vector<16x16x4xf32>
    %20 = vector.shape_cast %19 : vector<16x16x4xf32> to vector<256x4xf32>
    %c2_31 = arith.constant 2 : index
    %c2_32 = arith.constant 2 : index
    %c0_33 = arith.constant 0 : index
    %21 = vector.load %arg7[%c2_31, %c2_32, %c0_33] : memref<18x18x4xf32, #tpu.memory_space<vmem>>, vector<16x16x4xf32>
    %22 = vector.shape_cast %21 : vector<16x16x4xf32> to vector<256x4xf32>
    %23 = tpu.concatenate %6, %8, %10, %12, %14, %16, %18, %20, %22 in 1 : vector<256x4xf32>, vector<256x4xf32>, vector<256x4xf32>, vector<256x4xf32>, vector<256x4xf32>, vector<256x4xf32>, vector<256x4xf32>, vector<256x4xf32>, vector<256x4xf32> -> vector<256x36xf32>
    %c0_34 = arith.constant 0 : index
    %c0_35 = arith.constant 0 : index
    %24 = vector.load %arg2[%c0_34, %c0_35] : memref<8x36xf32, #tpu.memory_space<vmem>>, vector<8x36xf32>
    %cst_36 = arith.constant dense<0.000000e+00> : vector<8x256xf32>
    %25 = tpu.matmul %24, %23, %cst_36 {dimension_numbers = #tpu.dot_dimension_numbers<[1], [1], [0], [0], [0, 0, 1, 0], [], []>} : vector<8x36xf32>, vector<256x36xf32>, vector<8x256xf32> -> vector<8x256xf32>
    %c0_37 = arith.constant 0 : index
    %c0_38 = arith.constant 0 : index
    %26 = vector.load %arg3[%c0_37, %c0_38] : memref<8x1xf32, #tpu.memory_space<vmem>>, vector<8x1xf32>
    %27 = vector.broadcast %26 : vector<8x1xf32> to vector<8x256xf32>
    %28 = arith.addf %25, %27 : vector<8x256xf32>
    %c0_39 = arith.constant 0 : index
    %c0_40 = arith.constant 0 : index
    %c0_41 = arith.constant 0 : index
    %29 = vector.load %arg4[%c0_39, %c0_40, %c0_41] : memref<1x8x256xf32, #tpu.memory_space<vmem>>, vector<1x8x256xf32>
    %30 = vector.shape_cast %29 : vector<1x8x256xf32> to vector<8x256xf32>
    %31 = vector.shape_cast %28 : vector<8x256xf32> to vector<1x8x256xf32>
    tpu.vector_store %arg4[%c0_39, %c0_40, %c0_41], %31 {strides = array<i32>} : memref<1x8x256xf32, #tpu.memory_space<vmem>>, vector<1x8x256xf32>,
    %cst_42 = arith.constant dense<0.000000e+00> : vector<8xf32>
    %32 = vector.multi_reduction <add>, %28, %cst_42 [1] : vector<8x256xf32> to vector<8xf32>
    %33 = vector.shape_cast %32 : vector<8xf32> to vector<8x1xf32>
    %c0_43 = arith.constant 0 : index
    %c0_44 = arith.constant 0 : index
    %c0_45 = arith.constant 0 : index
    %34 = vector.load %arg5[%c0_43, %c0_44, %c0_45] : memref<1x8x1xf32, #tpu.memory_space<vmem>>, vector<1x8x1xf32>
    %35 = vector.shape_cast %34 : vector<1x8x1xf32> to vector<8x1xf32>
    %36 = vector.shape_cast %33 : vector<8x1xf32> to vector<1x8x1xf32>
    tpu.vector_store %arg5[%c0_43, %c0_44, %c0_45], %36 {strides = array<i32>} : memref<1x8x1xf32, #tpu.memory_space<vmem>>, vector<1x8x1xf32>,
    %37 = arith.mulf %28, %28 : vector<8x256xf32>
    %cst_46 = arith.constant dense<0.000000e+00> : vector<8xf32>
    %38 = vector.multi_reduction <add>, %37, %cst_46 [1] : vector<8x256xf32> to vector<8xf32>
    %39 = vector.shape_cast %38 : vector<8xf32> to vector<8x1xf32>
    %c0_47 = arith.constant 0 : index
    %c0_48 = arith.constant 0 : index
    %c0_49 = arith.constant 0 : index
    %40 = vector.load %arg6[%c0_47, %c0_48, %c0_49] : memref<1x8x1xf32, #tpu.memory_space<vmem>>, vector<1x8x1xf32>
    %41 = vector.shape_cast %40 : vector<1x8x1xf32> to vector<8x1xf32>
    %42 = vector.shape_cast %39 : vector<8x1xf32> to vector<1x8x1xf32>
    tpu.vector_store %arg6[%c0_47, %c0_48, %c0_49], %42 {strides = array<i32>} : memref<1x8x1xf32, #tpu.memory_space<vmem>>, vector<1x8x1xf32>,
    return
  }
  func.func @transform_0(%arg0: i32) -> (i32, i32, i32, i32) {
    %c0_i32 = arith.constant 0 : i32
    %c0_i32_0 = arith.constant 0 : i32
    %c0_i32_1 = arith.constant 0 : i32
    %c0_i32_2 = arith.constant 0 : i32
    return %arg0, %c0_i32, %c0_i32_0, %c0_i32_1 : i32, i32, i32, i32
  }
  func.func @transform_1(%arg0: i32) -> (i32, i32) {
    %c0_i32 = arith.constant 0 : i32
    %c0_i32_0 = arith.constant 0 : i32
    %c0_i32_1 = arith.constant 0 : i32
    return %c0_i32, %c0_i32_0 : i32, i32
  }
  func.func @transform_2(%arg0: i32) -> (i32, i32) {
    %c0_i32 = arith.constant 0 : i32
    %c0_i32_0 = arith.constant 0 : i32
    %c0_i32_1 = arith.constant 0 : i32
    return %c0_i32, %c0_i32_0 : i32, i32
  }
  func.func @transform_3(%arg0: i32) -> (i32, i32, i32) {
    %c0_i32 = arith.constant 0 : i32
    %c0_i32_0 = arith.constant 0 : i32
    %c0_i32_1 = arith.constant 0 : i32
    return %arg0, %c0_i32, %c0_i32_0 : i32, i32, i32
  }
  func.func @transform_4(%arg0: i32) -> (i32, i32, i32) {
    %c0_i32 = arith.constant 0 : i32
    %c0_i32_0 = arith.constant 0 : i32
    %c0_i32_1 = arith.constant 0 : i32
    return %arg0, %c0_i32, %c0_i32_0 : i32, i32, i32
  }
  func.func @transform_5(%arg0: i32) -> (i32, i32, i32) {
    %c0_i32 = arith.constant 0 : i32
    %c0_i32_0 = arith.constant 0 : i32
    %c0_i32_1 = arith.constant 0 : i32
    return %arg0, %c0_i32, %c0_i32_0 : i32, i32, i32
  }
}

</mosaic_0001>

<llo_original>
// kernel: tpu_custom_call.1
$region0: #{tpu_custom_call.1}
  #allocation0 [shape = 'u32[]', space=smem, size = 0x4, offset = 0x4, fixed_abs, tag = 'smem constant byte address 0x4 - core index']
  #allocation1 [shape = 'u32[144,128]{1,0:T(1,128)}', space=vmem, size = 0x12000, scoped, tag = 'internal scratch']
  #allocation2 [shape = 'f32[18,18,4]{2,1,0:T(8,128)}', space=vmem, size = 0x36000, scoped, tag = 'scratch operand']
  %s0 = inlined_call_operand.vmem [shape: f32[2,16,16,4], index: 0, kind: input, shape index: {}]
  %s1 = inlined_call_operand.vmem [shape: f32[8,36], index: 1, kind: input, shape index: {}]
  %s2 = inlined_call_operand.vmem [shape: f32[8,1], index: 2, kind: input, shape index: {}]
  %s3 = inlined_call_operand.hbm [shape: f32[2,8,256], index: 3, kind: output, shape index: {0}]
  %s4 = inlined_call_operand.vmem [shape: f32[2,8,1], index: 4, kind: output, shape index: {1}]
  %s5 = inlined_call_operand.vmem [shape: f32[2,8,1], index: 5, kind: output, shape index: {2}]
  %6 = xla_tuple %s3, %s4, %s5
  %s7 = sld [smem:[#allocation0]]
  $region61: #{tpu_custom_call.1} parent=0
    _
  %s9 = ssub.s32 1, %s7
  %s10 = scalar_select 0, %s9, %s7
  $region1: #{tpu_custom_call.1} parent=0
    #allocation3 [shape = 'u8[16384]{0}', space=vmem, size = 0x4000, scoped, tag = 'output window, operand 0']
    #allocation4 [shape = 's32[2]{0}', space=sflag, size = 0x8, scoped, tag = 'scoped memory for tpu_custom_call.1']
    %11 = vsyncpa [#allocation4], 0
    %s12 = scalar_lea.sflag [#allocation4], 1
    %13 = vsyncpa %s12, 0
    loop: start=0, step=1, limit=4
    $region2: #{tpu_custom_call.1} parent=1 // loop_pre_header
      _
    $region3: #{tpu_custom_call.1} parent=1 // loop_header
      %s15 = sphi 0, %s19
      %p16 = scmp.ge.s32.totalorder %s15, 4
      %s25 = sphi 0, %s27
      %s28 = sphi 0, %s25
      %s29 = sphi 0, %s28
      %s45 = sphi 0, %s29
      %s49 = sphi 0, %s49
      %s51 = sphi 0, %s49
      %s52 = sphi 0, %s51
      %s66 = sphi 0, %s52
      %s70 = sphi 0, %s70
      %s72 = sphi 0, %s70
      %s73 = sphi 0, %s72
      %s87 = sphi 0, %s73
      %s93 = sphi 0, %s95
      %s96 = sphi 0, %s93
      %s97 = sphi 0, %s96
      %s113 = sphi 0, %s97
      %s119 = sphi 0, %s121
      %s122 = sphi 0, %s119
      %s123 = sphi 0, %s122
      %s139 = sphi 0, %s123
      %s145 = sphi 0, %s147
      %s148 = sphi 0, %s145
      %s149 = sphi 0, %s148
      %s165 = sphi 0, %s149
    $region4: #{tpu_custom_call.1} parent=1 // loop_header_branch
      %18 = sbr.rel (%p16) target = $region8
    $region5: #{tpu_custom_call.1} parent=1 // loop_body
      %s20 = ssub.s32 %s15, 1
      %s21 = ssub.s32 %s15, 2
      %s22 = sadd.s32 %s15, 1
      %s23 = ssub.s32 %s15, %s22
      %p24 = scmp.eq.s32.totalorder %s23, 0
      %s26 = sadd.s32 %s25, 1
      %s27 = scalar_select %p24, %s25, %s26
      %p30 = pneg %p24
      %p31 = scmp.eq.s32.totalorder %s15, 1
      %p32 = por %p30, %p31
      %p33 = scmp.ne.s32.totalorder %s25, %s28
      %p34 = scmp.eq.s32.totalorder %s15, 0
      %p35 = por %p33, %p34
      %p36 = scmp.ne.s32.totalorder %s25, %s28
      %p37 = scmp.eq.s32.totalorder %s20, 1
      %p38 = por %p36, %p37
      %p39 = scmp.ne.s32.totalorder %s28, %s29
      %p40 = scmp.eq.s32.totalorder %s20, 0
      %p41 = por %p39, %p40
      %p42 = scmp.ne.s32.totalorder %s28, %s29
      %p43 = scmp.eq.s32.totalorder %s21, 1
      %p44 = por %p42, %p43
      %p46 = scmp.ne.s32.totalorder %s29, %s45
      %p47 = scmp.eq.s32.totalorder %s21, 0
      %p48 = por %p46, %p47
      %s50 = sadd.s32 %s49, 1
      %p53 = scmp.eq.s32.totalorder %s15, 1
      %p54 = scmp.ne.s32.totalorder %s49, %s51
      %p55 = scmp.eq.s32.totalorder %s15, 0
      %p56 = por %p54, %p55
      %p57 = scmp.ne.s32.totalorder %s49, %s51
      %p58 = scmp.eq.s32.totalorder %s20, 1
      %p59 = por %p57, %p58
      %p60 = scmp.ne.s32.totalorder %s51, %s52
      %p61 = scmp.eq.s32.totalorder %s20, 0
      %p62 = por %p60, %p61
      %p63 = scmp.ne.s32.totalorder %s51, %s52
      %p64 = scmp.eq.s32.totalorder %s21, 1
      %p65 = por %p63, %p64
      %p67 = scmp.ne.s32.totalorder %s52, %s66
      %p68 = scmp.eq.s32.totalorder %s21, 0
      %p69 = por %p67, %p68
      %s71 = sadd.s32 %s70, 1
      %p74 = scmp.eq.s32.totalorder %s15, 1
      %p75 = scmp.ne.s32.totalorder %s70, %s72
      %p76 = scmp.eq.s32.totalorder %s15, 0
      %p77 = por %p75, %p76
      %p78 = scmp.ne.s32.totalorder %s70, %s72
      %p79 = scmp.eq.s32.totalorder %s20, 1
      %p80 = por %p78, %p79
      %p81 = scmp.ne.s32.totalorder %s72, %s73
      %p82 = scmp.eq.s32.totalorder %s20, 0
      %p83 = por %p81, %p82
      %p84 = scmp.ne.s32.totalorder %s72, %s73
      %p85 = scmp.eq.s32.totalorder %s21, 1
      %p86 = por %p84, %p85
      %p88 = scmp.ne.s32.totalorder %s73, %s87
      %p89 = scmp.eq.s32.totalorder %s21, 0
      %p90 = por %p88, %p89
      %s91 = ssub.s32 %s15, %s22
      %p92 = scmp.eq.s32.totalorder %s91, 0
      %s94 = sadd.s32 %s93, 1
      %s95 = scalar_select %p92, %s93, %s94
      %p98 = pneg %p92
      %p99 = scmp.eq.s32.totalorder %s15, 1
      %p100 = por %p98, %p99
      %p101 = scmp.ne.s32.totalorder %s93, %s96
      %p102 = scmp.eq.s32.totalorder %s15, 0
      %p103 = por %p101, %p102
      %p104 = scmp.ne.s32.totalorder %s93, %s96
      %p105 = scmp.eq.s32.totalorder %s20, 1
      %p106 = por %p104, %p105
      %p107 = scmp.ne.s32.totalorder %s96, %s97
      %p108 = scmp.eq.s32.totalorder %s20, 0
      %p109 = por %p107, %p108
      %p110 = scmp.ne.s32.totalorder %s96, %s97
      %p111 = scmp.eq.s32.totalorder %s21, 1
      %p112 = por %p110, %p111
      %p114 = scmp.ne.s32.totalorder %s97, %s113
      %p115 = scmp.eq.s32.totalorder %s21, 0
      %p116 = por %p114, %p115
      %s117 = ssub.s32 %s15, %s22
      %p118 = scmp.eq.s32.totalorder %s117, 0
      %s120 = sadd.s32 %s119, 1
      %s121 = scalar_select %p118, %s119, %s120
      %p124 = pneg %p118
      %p125 = scmp.eq.s32.totalorder %s15, 1
      %p126 = por %p124, %p125
      %p127 = scmp.ne.s32.totalorder %s119, %s122
      %p128 = scmp.eq.s32.totalorder %s15, 0
      %p129 = por %p127, %p128
      %p130 = scmp.ne.s32.totalorder %s119, %s122
      %p131 = scmp.eq.s32.totalorder %s20, 1
      %p132 = por %p130, %p131
      %p133 = scmp.ne.s32.totalorder %s122, %s123
      %p134 = scmp.eq.s32.totalorder %s20, 0
      %p135 = por %p133, %p134
      %p136 = scmp.ne.s32.totalorder %s122, %s123
      %p137 = scmp.eq.s32.totalorder %s21, 1
      %p138 = por %p136, %p137
      %p140 = scmp.ne.s32.totalorder %s123, %s139
      %p141 = scmp.eq.s32.totalorder %s21, 0
      %p142 = por %p140, %p141
      %s143 = ssub.s32 %s15, %s22
      %p144 = scmp.eq.s32.totalorder %s143, 0
      %s146 = sadd.s32 %s145, 1
      %s147 = scalar_select %p144, %s145, %s146
      %p150 = pneg %p144
      %p151 = scmp.eq.s32.totalorder %s15, 1
      %p152 = por %p150, %p151
      %p153 = scmp.ne.s32.totalorder %s145, %s148
      %p154 = scmp.eq.s32.totalorder %s15, 0
      %p155 = por %p153, %p154
      %p156 = scmp.ne.s32.totalorder %s145, %s148
      %p157 = scmp.eq.s32.totalorder %s20, 1
      %p158 = por %p156, %p157
      %p159 = scmp.ne.s32.totalorder %s148, %s149
      %p160 = scmp.eq.s32.totalorder %s20, 0
      %p161 = por %p159, %p160
      %p162 = scmp.ne.s32.totalorder %s148, %s149
      %p163 = scmp.eq.s32.totalorder %s21, 1
      %p164 = por %p162, %p163
      %p166 = scmp.ne.s32.totalorder %s149, %s165
      %p167 = scmp.eq.s32.totalorder %s21, 0
      %p168 = por %p166, %p167
      %p169 = scmp.le.s32.totalorder 1, %s15
      %p170 = scmp.lt.s32.totalorder %s15, 3
      %p171 = pnand %p169, %p170
      %p172 = pneg %p171
      // Predicated region
      $region9: #{tpu_custom_call.1} parent=5 // pred_check
        _
      $region10: #{tpu_custom_call.1} parent=5 // pred_check_branch
        %174 = sbr.rel (%p171) target = $region12
      $region11: #{tpu_custom_call.1} parent=5 // pred_region
        %s175 = ssub.s32 %s15, 1
        // Predicated region
        $region13: #{tpu_custom_call.1} parent=11 // pred_check
          %p176 = pneg %p62
        $region14: #{tpu_custom_call.1} parent=11 // pred_check_branch
          %178 = sbr.rel (%p176) target = $region16
        $region15: #{tpu_custom_call.1} parent=11 // pred_region
          _
        $region16: #{tpu_custom_call.1} parent=11 // pred_fallthru
          _
        // Predicated region
        $region17: #{tpu_custom_call.1} parent=11 // pred_check
          %p179 = pneg %p83
        $region18: #{tpu_custom_call.1} parent=11 // pred_check_branch
          %181 = sbr.rel (%p179) target = $region20
        $region19: #{tpu_custom_call.1} parent=11 // pred_region
          _
        $region20: #{tpu_custom_call.1} parent=11 // pred_fallthru
          _
      $region12: #{tpu_custom_call.1} parent=5 // pred_fallthru
        _
      %p182 = scmp.lt.s32.totalorder %s15, 2
      // Predicated region
      $region21: #{tpu_custom_call.1} parent=5 // pred_check
        %p183 = pneg %p182
      $region22: #{tpu_custom_call.1} parent=5 // pred_check_branch
        %185 = sbr.rel (%p183) target = $region24
      $region23: #{tpu_custom_call.1} parent=5 // pred_region
        // Predicated region
        $region25: #{tpu_custom_call.1} parent=23 // pred_check
          %p186 = pneg %p35
        $region26: #{tpu_custom_call.1} parent=23 // pred_check_branch
          %188 = sbr.rel (%p186) target = $region28
        $region27: #{tpu_custom_call.1} parent=23 // pred_region
          %p189 = scmp.lt.s32.totalorder %s15, 1
          %s190 = scalar_select %p189, %s15, 1
          %s191 = smul.addr %s190, 32
          %s192 = smul.addr %s191, 8
          %s193 = scalar_lea.vmem %s0, %s192
        $region28: #{tpu_custom_call.1} parent=23 // pred_fallthru
          _
      $region24: #{tpu_custom_call.1} parent=5 // pred_fallthru
        _
      %p194 = scmp.le.s32.totalorder 1, %s15
      %p195 = scmp.lt.s32.totalorder %s15, 3
      %p196 = pnand %p194, %p195
      %p197 = pneg %p196
      // Predicated region
      $region29: #{tpu_custom_call.1} parent=5 // pred_check
        _
      $region30: #{tpu_custom_call.1} parent=5 // pred_check_branch
        %199 = sbr.rel (%p196) target = $region32
      $region31: #{tpu_custom_call.1} parent=5 // pred_region
        %s200 = ssub.s32 %s15, 1
        %p201 = scmp.lt.s32.totalorder %s20, 1
        %s202 = scalar_select %p201, %s20, 1
        %s203 = smul.addr %s202, 32
        %s204 = smul.addr %s203, 8
        %s205 = scalar_lea.vmem %s0, %s204
        %p206 = pneg %p41
        %p207 = pneg %p38
        %p208 = pneg %p62
        %p209 = pneg %p59
        %p210 = pneg %p83
        %p211 = pneg %p80
        %p212 = pneg %p109
        %p213 = pneg %p106
        %s214 = sand.u32 %s96, 1
        %s215 = scalar_lea.sflag [#allocation4], %s214
        %s216 = sand.u32 %s96, 1
        %s217 = smul.addr %s216, 16
        %s218 = scalar_lea.vmem [#allocation3], %s217
        %p219 = pneg %p135
        %p220 = pneg %p132
        %p221 = scmp.lt.s32.totalorder %s20, 1
        %s222 = scalar_select %p221, %s20, 1
        %s223 = smul.addr %s222, 8
        %s224 = scalar_lea.vmem %s4, %s223
        %p225 = pneg %p161
        %p226 = pneg %p158
        %p227 = scmp.lt.s32.totalorder %s20, 1
        %s228 = scalar_select %p227, %s20, 1
        %s229 = smul.addr %s228, 8
        %s230 = scalar_lea.vmem %s5, %s229
        %p231 = scmp.lt.s32.totalorder %s20, 1
        %s232 = scalar_select %p231, %s20, 1
        %s233 = smul.addr %s232, 32
        %s234 = smul.addr %s233, 8
        %s235 = scalar_lea.vmem %s0, %s234
        %p236 = scmp.lt.s32.totalorder %s20, 1
        %s237 = scalar_select %p236, %s20, 1
        %s238 = smul.addr %s237, 8
        %s239 = scalar_lea.vmem %s4, %s238
        %p240 = scmp.lt.s32.totalorder %s20, 1
        %s241 = scalar_select %p240, %s20, 1
        %s242 = smul.addr %s241, 8
        %s243 = scalar_lea.vmem %s5, %s242
        %vm244 = vcmask 31744
        %245 = vst.msk [vmem:[#allocation2] sm:$0xff] %vm244, 0.0
        %246 = vst.msk [vmem:[#allocation2 + $0x8] sm:$0xff] %vm244, 0.0
        %vm247 = vcmask 25600
        %248 = vst.msk [vmem:[#allocation2 + $0x10] sm:$0x3] %vm247, 0.0
        %249 = vst.msk [vmem:[#allocation2 + $0x18] sm:$0xff] %vm244, 0.0
        %250 = vst.msk [vmem:[#allocation2 + $0x20] sm:$0xff] %vm244, 0.0
        %251 = vst.msk [vmem:[#allocation2 + $0x28] sm:$0x3] %vm247, 0.0
        %252 = vst.msk [vmem:[#allocation2 + $0x30] sm:$0xff] %vm244, 0.0
        %253 = vst.msk [vmem:[#allocation2 + $0x38] sm:$0xff] %vm244, 0.0
        %254 = vst.msk [vmem:[#allocation2 + $0x40] sm:$0x3] %vm247, 0.0
        %255 = vst.msk [vmem:[#allocation2 + $0x48] sm:$0xff] %vm244, 0.0
        %256 = vst.msk [vmem:[#allocation2 + $0x50] sm:$0xff] %vm244, 0.0
        %257 = vst.msk [vmem:[#allocation2 + $0x58] sm:$0x3] %vm247, 0.0
        %258 = vst.msk [vmem:[#allocation2 + $0x60] sm:$0xff] %vm244, 0.0
        %259 = vst.msk [vmem:[#allocation2 + $0x68] sm:$0xff] %vm244, 0.0
        %260 = vst.msk [vmem:[#allocation2 + $0x70] sm:$0x3] %vm247, 0.0
        %261 = vst.msk [vmem:[#allocation2 + $0x78] sm:$0xff] %vm244, 0.0
        %262 = vst.msk [vmem:[#allocation2 + $0x80] sm:$0xff] %vm244, 0.0
        %263 = vst.msk [vmem:[#allocation2 + $0x88] sm:$0x3] %vm247, 0.0
        %264 = vst.msk [vmem:[#allocation2 + $0x90] sm:$0xff] %vm244, 0.0
        %265 = vst.msk [vmem:[#allocation2 + $0x98] sm:$0xff] %vm244, 0.0
        %266 = vst.msk [vmem:[#allocation2 + $0xa0] sm:$0x3] %vm247, 0.0
        %267 = vst.msk [vmem:[#allocation2 + $0xa8] sm:$0xff] %vm244, 0.0
        %268 = vst.msk [vmem:[#allocation2 + $0xb0] sm:$0xff] %vm244, 0.0
        %269 = vst.msk [vmem:[#allocation2 + $0xb8] sm:$0x3] %vm247, 0.0
        %270 = vst.msk [vmem:[#allocation2 + $0xc0] sm:$0xff] %vm244, 0.0
        %271 = vst.msk [vmem:[#allocation2 + $0xc8] sm:$0xff] %vm244, 0.0
        %272 = vst.msk [vmem:[#allocation2 + $0xd0] sm:$0x3] %vm247, 0.0
        %273 = vst.msk [vmem:[#allocation2 + $0xd8] sm:$0xff] %vm244, 0.0
        %274 = vst.msk [vmem:[#allocation2 + $0xe0] sm:$0xff] %vm244, 0.0
        %275 = vst.msk [vmem:[#allocation2 + $0xe8] sm:$0x3] %vm247, 0.0
        %276 = vst.msk [vmem:[#allocation2 + $0xf0] sm:$0xff] %vm244, 0.0
        %277 = vst.msk [vmem:[#allocation2 + $0xf8] sm:$0xff] %vm244, 0.0
        %278 = vst.msk [vmem:[#allocation2 + $0x100] sm:$0x3] %vm247, 0.0
        %279 = vst.msk [vmem:[#allocation2 + $0x108] sm:$0xff] %vm244, 0.0
        %280 = vst.msk [vmem:[#allocation2 + $0x110] sm:$0xff] %vm244, 0.0
        %281 = vst.msk [vmem:[#allocation2 + $0x118] sm:$0x3] %vm247, 0.0
        %282 = vst.msk [vmem:[#allocation2 + $0x120] sm:$0xff] %vm244, 0.0
        %283 = vst.msk [vmem:[#allocation2 + $0x128] sm:$0xff] %vm244, 0.0
        %284 = vst.msk [vmem:[#allocation2 + $0x130] sm:$0x3] %vm247, 0.0
        %285 = vst.msk [vmem:[#allocation2 + $0x138] sm:$0xff] %vm244, 0.0
        %286 = vst.msk [vmem:[#allocation2 + $0x140] sm:$0xff] %vm244, 0.0
        %287 = vst.msk [vmem:[#allocation2 + $0x148] sm:$0x3] %vm247, 0.0
        %288 = vst.msk [vmem:[#allocation2 + $0x150] sm:$0xff] %vm244, 0.0
        %289 = vst.msk [vmem:[#allocation2 + $0x158] sm:$0xff] %vm244, 0.0
        %290 = vst.msk [vmem:[#allocation2 + $0x160] sm:$0x3] %vm247, 0.0
        %291 = vst.msk [vmem:[#allocation2 + $0x168] sm:$0xff] %vm244, 0.0
        %292 = vst.msk [vmem:[#allocation2 + $0x170] sm:$0xff] %vm244, 0.0
        %293 = vst.msk [vmem:[#allocation2 + $0x178] sm:$0x3] %vm247, 0.0
        %294 = vst.msk [vmem:[#allocation2 + $0x180] sm:$0xff] %vm244, 0.0
        %295 = vst.msk [vmem:[#allocation2 + $0x188] sm:$0xff] %vm244, 0.0
        %296 = vst.msk [vmem:[#allocation2 + $0x190] sm:$0x3] %vm247, 0.0
        %297 = vst.msk [vmem:[#allocation2 + $0x198] sm:$0xff] %vm244, 0.0
        %298 = vst.msk [vmem:[#allocation2 + $0x1a0] sm:$0xff] %vm244, 0.0
        %299 = vst.msk [vmem:[#allocation2 + $0x1a8] sm:$0x3] %vm247, 0.0
        %v300 = vld [vmem:[%s235] sm:$0xff]
        %v301 = vld [vmem:[%s235 + $0x8] sm:$0xff]
        %v302 = vld [vmem:[%s235 + $0x10] sm:$0xff]
        %v303 = vld [vmem:[%s235 + $0x18] sm:$0xff]
        %v304 = vld [vmem:[%s235 + $0x20] sm:$0xff]
        %v305 = vld [vmem:[%s235 + $0x28] sm:$0xff]
        %v306 = vld [vmem:[%s235 + $0x30] sm:$0xff]
        %v307 = vld [vmem:[%s235 + $0x38] sm:$0xff]
        %v308 = vld [vmem:[%s235 + $0x40] sm:$0xff]
        %v309 = vld [vmem:[%s235 + $0x48] sm:$0xff]
        %v310 = vld [vmem:[%s235 + $0x50] sm:$0xff]
        %v311 = vld [vmem:[%s235 + $0x58] sm:$0xff]
        %v312 = vld [vmem:[%s235 + $0x60] sm:$0xff]
        %v313 = vld [vmem:[%s235 + $0x68] sm:$0xff]
        %v314 = vld [vmem:[%s235 + $0x70] sm:$0xff]
        %v315 = vld [vmem:[%s235 + $0x78] sm:$0xff]
        %v316 = vld [vmem:[%s235 + $0x80] sm:$0xff]
        %v317 = vld [vmem:[%s235 + $0x88] sm:$0xff]
        %v318 = vld [vmem:[%s235 + $0x90] sm:$0xff]
        %v319 = vld [vmem:[%s235 + $0x98] sm:$0xff]
        %v320 = vld [vmem:[%s235 + $0xa0] sm:$0xff]
        %v321 = vld [vmem:[%s235 + $0xa8] sm:$0xff]
        %v322 = vld [vmem:[%s235 + $0xb0] sm:$0xff]
        %v323 = vld [vmem:[%s235 + $0xb8] sm:$0xff]
        %v324 = vld [vmem:[%s235 + $0xc0] sm:$0xff]
        %v325 = vld [vmem:[%s235 + $0xc8] sm:$0xff]
        %v326 = vld [vmem:[%s235 + $0xd0] sm:$0xff]
        %v327 = vld [vmem:[%s235 + $0xd8] sm:$0xff]
        %v328 = vld [vmem:[%s235 + $0xe0] sm:$0xff]
        %v329 = vld [vmem:[%s235 + $0xe8] sm:$0xff]
        %v330 = vld [vmem:[%s235 + $0xf0] sm:$0xff]
        %v331 = vld [vmem:[%s235 + $0xf8] sm:$0xff]
        %s332 = scalar_lea.vmem [#allocation2], 24
        %333 = vst.msk [vmem:[%s332 + $0x1] sm:$0xff] %vm244, %v300
        %334 = vst.msk [vmem:[%s332 + $0x9] sm:$0xff] %vm244, %v301
        %335 = vst.msk [vmem:[%s332 + $0x19] sm:$0xff] %vm244, %v302
        %336 = vst.msk [vmem:[%s332 + $0x21] sm:$0xff] %vm244, %v303
        %337 = vst.msk [vmem:[%s332 + $0x31] sm:$0xff] %vm244, %v304
        %338 = vst.msk [vmem:[%s332 + $0x39] sm:$0xff] %vm244, %v305
        %339 = vst.msk [vmem:[%s332 + $0x49] sm:$0xff] %vm244, %v306
        %340 = vst.msk [vmem:[%s332 + $0x51] sm:$0xff] %vm244, %v307
        %341 = vst.msk [vmem:[%s332 + $0x61] sm:$0xff] %vm244, %v308
        %342 = vst.msk [vmem:[%s332 + $0x69] sm:$0xff] %vm244, %v309
        %343 = vst.msk [vmem:[%s332 + $0x79] sm:$0xff] %vm244, %v310
        %344 = vst.msk [vmem:[%s332 + $0x81] sm:$0xff] %vm244, %v311
        %345 = vst.msk [vmem:[%s332 + $0x91] sm:$0xff] %vm244, %v312
        %346 = vst.msk [vmem:[%s332 + $0x99] sm:$0xff] %vm244, %v313
        %347 = vst.msk [vmem:[%s332 + $0xa9] sm:$0xff] %vm244, %v314
        %348 = vst.msk [vmem:[%s332 + $0xb1] sm:$0xff] %vm244, %v315
        %349 = vst.msk [vmem:[%s332 + $0xc1] sm:$0xff] %vm244, %v316
        %350 = vst.msk [vmem:[%s332 + $0xc9] sm:$0xff] %vm244, %v317
        %351 = vst.msk [vmem:[%s332 + $0xd9] sm:$0xff] %vm244, %v318
        %352 = vst.msk [vmem:[%s332 + $0xe1] sm:$0xff] %vm244, %v319
        %353 = vst.msk [vmem:[%s332 + $0xf1] sm:$0xff] %vm244, %v320
        %354 = vst.msk [vmem:[%s332 + $0xf9] sm:$0xff] %vm244, %v321
        %355 = vst.msk [vmem:[%s332 + $0x109] sm:$0xff] %vm244, %v322
        %356 = vst.msk [vmem:[%s332 + $0x111] sm:$0xff] %vm244, %v323
        %357 = vst.msk [vmem:[%s332 + $0x121] sm:$0xff] %vm244, %v324
        %358 = vst.msk [vmem:[%s332 + $0x129] sm:$0xff] %vm244, %v325
        %359 = vst.msk [vmem:[%s332 + $0x139] sm:$0xff] %vm244, %v326
        %360 = vst.msk [vmem:[%s332 + $0x141] sm:$0xff] %vm244, %v327
        %361 = vst.msk [vmem:[%s332 + $0x151] sm:$0xff] %vm244, %v328
        %362 = vst.msk [vmem:[%s332 + $0x159] sm:$0xff] %vm244, %v329
        %363 = vst.msk [vmem:[%s332 + $0x169] sm:$0xff] %vm244, %v330
        %364 = vst.msk [vmem:[%s332 + $0x171] sm:$0xff] %vm244, %v331
        %v365 = vld [vmem:[#allocation2] sm:$0xff]
        %v366 = vld [vmem:[#allocation2 + $0x8] sm:$0xff]
        %v367 = vld [vmem:[#allocation2 + $0x18] sm:$0xff]
        %v368 = vld [vmem:[#allocation2 + $0x20] sm:$0xff]
        %v369 = vld [vmem:[#allocation2 + $0x30] sm:$0xff]
        %v370 = vld [vmem:[#allocation2 + $0x38] sm:$0xff]
        %v371 = vld [vmem:[#allocation2 + $0x48] sm:$0xff]
        %v372 = vld [vmem:[#allocation2 + $0x50] sm:$0xff]
        %v373 = vld [vmem:[#allocation2 + $0x60] sm:$0xff]
        %v374 = vld [vmem:[#allocation2 + $0x68] sm:$0xff]
        %v375 = vld [vmem:[#allocation2 + $0x78] sm:$0xff]
        %v376 = vld [vmem:[#allocation2 + $0x80] sm:$0xff]
        %v377 = vld [vmem:[#allocation2 + $0x90] sm:$0xff]
        %v378 = vld [vmem:[#allocation2 + $0x98] sm:$0xff]
        %v379 = vld [vmem:[#allocation2 + $0xa8] sm:$0xff]
        %v380 = vld [vmem:[#allocation2 + $0xb0] sm:$0xff]
        %v381 = vld [vmem:[#allocation2 + $0xc0] sm:$0xff]
        %v382 = vld [vmem:[#allocation2 + $0xc8] sm:$0xff]
        %v383 = vld [vmem:[#allocation2 + $0xd8] sm:$0xff]
        %v384 = vld [vmem:[#allocation2 + $0xe0] sm:$0xff]
        %v385 = vld [vmem:[#allocation2 + $0xf0] sm:$0xff]
        %v386 = vld [vmem:[#allocation2 + $0xf8] sm:$0xff]
        %v387 = vld [vmem:[#allocation2 + $0x108] sm:$0xff]
        %v388 = vld [vmem:[#allocation2 + $0x110] sm:$0xff]
        %v389 = vld [vmem:[#allocation2 + $0x120] sm:$0xff]
        %v390 = vld [vmem:[#allocation2 + $0x128] sm:$0xff]
        %v391 = vld [vmem:[#allocation2 + $0x138] sm:$0xff]
        %v392 = vld [vmem:[#allocation2 + $0x140] sm:$0xff]
        %v393 = vld [vmem:[#allocation2 + $0x150] sm:$0xff]
        %v394 = vld [vmem:[#allocation2 + $0x158] sm:$0xff]
        %v395 = vld [vmem:[#allocation2 + $0x168] sm:$0xff]
        %v396 = vld [vmem:[#allocation2 + $0x170] sm:$0xff]
        %v397 = vld [vmem:[#allocation2 + $0x1] sm:$0xff]
        %v398 = vld [vmem:[#allocation2 + $0x9] sm:$0xff]
        %v399 = vld [vmem:[#allocation2 + $0x19] sm:$0xff]
        %v400 = vld [vmem:[#allocation2 + $0x21] sm:$0xff]
        %v401 = vld [vmem:[#allocation2 + $0x31] sm:$0xff]
        %v402 = vld [vmem:[#allocation2 + $0x39] sm:$0xff]
        %v403 = vld [vmem:[#allocation2 + $0x49] sm:$0xff]
        %v404 = vld [vmem:[#allocation2 + $0x51] sm:$0xff]
        %v405 = vld [vmem:[#allocation2 + $0x61] sm:$0xff]
        %v406 = vld [vmem:[#allocation2 + $0x69] sm:$0xff]
        %v407 = vld [vmem:[#allocation2 + $0x79] sm:$0xff]
        %v408 = vld [vmem:[#allocation2 + $0x81] sm:$0xff]
        %v409 = vld [vmem:[#allocation2 + $0x91] sm:$0xff]
        %v410 = vld [vmem:[#allocation2 + $0x99] sm:$0xff]
        %v411 = vld [vmem:[#allocation2 + $0xa9] sm:$0xff]
        %v412 = vld [vmem:[#allocation2 + $0xb1] sm:$0xff]
        %v413 = vld [vmem:[#allocation2 + $0xc1] sm:$0xff]
        %v414 = vld [vmem:[#allocation2 + $0xc9] sm:$0xff]
        %v415 = vld [vmem:[#allocation2 + $0xd9] sm:$0xff]
        %v416 = vld [vmem:[#allocation2 + $0xe1] sm:$0xff]
        %v417 = vld [vmem:[#allocation2 + $0xf1] sm:$0xff]
        %v418 = vld [vmem:[#allocation2 + $0xf9] sm:$0xff]
        %v419 = vld [vmem:[#allocation2 + $0x109] sm:$0xff]
        %v420 = vld [vmem:[#allocation2 + $0x111] sm:$0xff]
        %v421 = vld [vmem:[#allocation2 + $0x121] sm:$0xff]
        %v422 = vld [vmem:[#allocation2 + $0x129] sm:$0xff]
        %v423 = vld [vmem:[#allocation2 + $0x139] sm:$0xff]
        %v424 = vld [vmem:[#allocation2 + $0x141] sm:$0xff]
        %v425 = vld [vmem:[#allocation2 + $0x151] sm:$0xff]
        %v426 = vld [vmem:[#allocation2 + $0x159] sm:$0xff]
        %v427 = vld [vmem:[#allocation2 + $0x169] sm:$0xff]
        %v428 = vld [vmem:[#allocation2 + $0x171] sm:$0xff]
        %v429 = vld [vmem:[#allocation2 + $0x2] sm:$0xff]
        %v430 = vld [vmem:[#allocation2 + $0xa] sm:$0xff]
        %v431 = vld [vmem:[#allocation2 + $0x1a] sm:$0xff]
        %v432 = vld [vmem:[#allocation2 + $0x22] sm:$0xff]
        %v433 = vld [vmem:[#allocation2 + $0x32] sm:$0xff]
        %v434 = vld [vmem:[#allocation2 + $0x3a] sm:$0xff]
        %v435 = vld [vmem:[#allocation2 + $0x4a] sm:$0xff]
        %v436 = vld [vmem:[#allocation2 + $0x52] sm:$0xff]
        %v437 = vld [vmem:[#allocation2 + $0x62] sm:$0xff]
        %v438 = vld [vmem:[#allocation2 + $0x6a] sm:$0xff]
        %v439 = vld [vmem:[#allocation2 + $0x7a] sm:$0xff]
        %v440 = vld [vmem:[#allocation2 + $0x82] sm:$0xff]
        %v441 = vld [vmem:[#allocation2 + $0x92] sm:$0xff]
        %v442 = vld [vmem:[#allocation2 + $0x9a] sm:$0xff]
        %v443 = vld [vmem:[#allocation2 + $0xaa] sm:$0xff]
        %v444 = vld [vmem:[#allocation2 + $0xb2] sm:$0xff]
        %v445 = vld [vmem:[#allocation2 + $0xc2] sm:$0xff]
        %v446 = vld [vmem:[#allocation2 + $0xca] sm:$0xff]
        %v447 = vld [vmem:[#allocation2 + $0xda] sm:$0xff]
        %v448 = vld [vmem:[#allocation2 + $0xe2] sm:$0xff]
        %v449 = vld [vmem:[#allocation2 + $0xf2] sm:$0xff]
        %v450 = vld [vmem:[#allocation2 + $0xfa] sm:$0xff]
        %v451 = vld [vmem:[#allocation2 + $0x10a] sm:$0xff]
        %v452 = vld [vmem:[#allocation2 + $0x112] sm:$0xff]
        %v453 = vld [vmem:[#allocation2 + $0x122] sm:$0xff]
        %v454 = vld [vmem:[#allocation2 + $0x12a] sm:$0xff]
        %v455 = vld [vmem:[#allocation2 + $0x13a] sm:$0xff]
        %v456 = vld [vmem:[#allocation2 + $0x142] sm:$0xff]
        %v457 = vld [vmem:[#allocation2 + $0x152] sm:$0xff]
        %v458 = vld [vmem:[#allocation2 + $0x15a] sm:$0xff]
        %v459 = vld [vmem:[#allocation2 + $0x16a] sm:$0xff]
        %v460 = vld [vmem:[#allocation2 + $0x172] sm:$0xff]
        %v461 = vld [vmem:[%s332] sm:$0xff]
        %v462 = vld [vmem:[%s332 + $0x8] sm:$0xff]
        %v463 = vld [vmem:[%s332 + $0x18] sm:$0xff]
        %v464 = vld [vmem:[%s332 + $0x20] sm:$0xff]
        %v465 = vld [vmem:[%s332 + $0x30] sm:$0xff]
        %v466 = vld [vmem:[%s332 + $0x38] sm:$0xff]
        %v467 = vld [vmem:[%s332 + $0x48] sm:$0xff]
        %v468 = vld [vmem:[%s332 + $0x50] sm:$0xff]
        %v469 = vld [vmem:[%s332 + $0x60] sm:$0xff]
        %v470 = vld [vmem:[%s332 + $0x68] sm:$0xff]
        %v471 = vld [vmem:[%s332 + $0x78] sm:$0xff]
        %v472 = vld [vmem:[%s332 + $0x80] sm:$0xff]
        %v473 = vld [vmem:[%s332 + $0x90] sm:$0xff]
        %v474 = vld [vmem:[%s332 + $0x98] sm:$0xff]
        %v475 = vld [vmem:[%s332 + $0xa8] sm:$0xff]
        %v476 = vld [vmem:[%s332 + $0xb0] sm:$0xff]
        %v477 = vld [vmem:[%s332 + $0xc0] sm:$0xff]
        %v478 = vld [vmem:[%s332 + $0xc8] sm:$0xff]
        %v479 = vld [vmem:[%s332 + $0xd8] sm:$0xff]
        %v480 = vld [vmem:[%s332 + $0xe0] sm:$0xff]
        %v481 = vld [vmem:[%s332 + $0xf0] sm:$0xff]
        %v482 = vld [vmem:[%s332 + $0xf8] sm:$0xff]
        %v483 = vld [vmem:[%s332 + $0x108] sm:$0xff]
        %v484 = vld [vmem:[%s332 + $0x110] sm:$0xff]
        %v485 = vld [vmem:[%s332 + $0x120] sm:$0xff]
        %v486 = vld [vmem:[%s332 + $0x128] sm:$0xff]
        %v487 = vld [vmem:[%s332 + $0x138] sm:$0xff]
        %v488 = vld [vmem:[%s332 + $0x140] sm:$0xff]
        %v489 = vld [vmem:[%s332 + $0x150] sm:$0xff]
        %v490 = vld [vmem:[%s332 + $0x158] sm:$0xff]
        %v491 = vld [vmem:[%s332 + $0x168] sm:$0xff]
        %v492 = vld [vmem:[%s332 + $0x170] sm:$0xff]
        %v493 = vld [vmem:[%s332 + $0x1] sm:$0xff]
        %v494 = vld [vmem:[%s332 + $0x9] sm:$0xff]
        %v495 = vld [vmem:[%s332 + $0x19] sm:$0xff]
        %v496 = vld [vmem:[%s332 + $0x21] sm:$0xff]
        %v497 = vld [vmem:[%s332 + $0x31] sm:$0xff]
        %v498 = vld [vmem:[%s332 + $0x39] sm:$0xff]
        %v499 = vld [vmem:[%s332 + $0x49] sm:$0xff]
        %v500 = vld [vmem:[%s332 + $0x51] sm:$0xff]
        %v501 = vld [vmem:[%s332 + $0x61] sm:$0xff]
        %v502 = vld [vmem:[%s332 + $0x69] sm:$0xff]
        %v503 = vld [vmem:[%s332 + $0x79] sm:$0xff]
        %v504 = vld [vmem:[%s332 + $0x81] sm:$0xff]
        %v505 = vld [vmem:[%s332 + $0x91] sm:$0xff]
        %v506 = vld [vmem:[%s332 + $0x99] sm:$0xff]
        %v507 = vld [vmem:[%s332 + $0xa9] sm:$0xff]
        %v508 = vld [vmem:[%s332 + $0xb1] sm:$0xff]
        %v509 = vld [vmem:[%s332 + $0xc1] sm:$0xff]
        %v510 = vld [vmem:[%s332 + $0xc9] sm:$0xff]
        %v511 = vld [vmem:[%s332 + $0xd9] sm:$0xff]
        %v512 = vld [vmem:[%s332 + $0xe1] sm:$0xff]
        %v513 = vld [vmem:[%s332 + $0xf1] sm:$0xff]
        %v514 = vld [vmem:[%s332 + $0xf9] sm:$0xff]
        %v515 = vld [vmem:[%s332 + $0x109] sm:$0xff]
        %v516 = vld [vmem:[%s332 + $0x111] sm:$0xff]
        %v517 = vld [vmem:[%s332 + $0x121] sm:$0xff]
        %v518 = vld [vmem:[%s332 + $0x129] sm:$0xff]
        %v519 = vld [vmem:[%s332 + $0x139] sm:$0xff]
        %v520 = vld [vmem:[%s332 + $0x141] sm:$0xff]
        %v521 = vld [vmem:[%s332 + $0x151] sm:$0xff]
        %v522 = vld [vmem:[%s332 + $0x159] sm:$0xff]
        %v523 = vld [vmem:[%s332 + $0x169] sm:$0xff]
        %v524 = vld [vmem:[%s332 + $0x171] sm:$0xff]
        %v525 = vld [vmem:[%s332 + $0x2] sm:$0xff]
        %v526 = vld [vmem:[%s332 + $0xa] sm:$0xff]
        %v527 = vld [vmem:[%s332 + $0x1a] sm:$0xff]
        %v528 = vld [vmem:[%s332 + $0x22] sm:$0xff]
        %v529 = vld [vmem:[%s332 + $0x32] sm:$0xff]
        %v530 = vld [vmem:[%s332 + $0x3a] sm:$0xff]
        %v531 = vld [vmem:[%s332 + $0x4a] sm:$0xff]
        %v532 = vld [vmem:[%s332 + $0x52] sm:$0xff]
        %v533 = vld [vmem:[%s332 + $0x62] sm:$0xff]
        %v534 = vld [vmem:[%s332 + $0x6a] sm:$0xff]
        %v535 = vld [vmem:[%s332 + $0x7a] sm:$0xff]
        %v536 = vld [vmem:[%s332 + $0x82] sm:$0xff]
        %v537 = vld [vmem:[%s332 + $0x92] sm:$0xff]
        %v538 = vld [vmem:[%s332 + $0x9a] sm:$0xff]
        %v539 = vld [vmem:[%s332 + $0xaa] sm:$0xff]
        %v540 = vld [vmem:[%s332 + $0xb2] sm:$0xff]
        %v541 = vld [vmem:[%s332 + $0xc2] sm:$0xff]
        %v542 = vld [vmem:[%s332 + $0xca] sm:$0xff]
        %v543 = vld [vmem:[%s332 + $0xda] sm:$0xff]
        %v544 = vld [vmem:[%s332 + $0xe2] sm:$0xff]
        %v545 = vld [vmem:[%s332 + $0xf2] sm:$0xff]
        %v546 = vld [vmem:[%s332 + $0xfa] sm:$0xff]
        %v547 = vld [vmem:[%s332 + $0x10a] sm:$0xff]
        %v548 = vld [vmem:[%s332 + $0x112] sm:$0xff]
        %v549 = vld [vmem:[%s332 + $0x122] sm:$0xff]
        %v550 = vld [vmem:[%s332 + $0x12a] sm:$0xff]
        %v551 = vld [vmem:[%s332 + $0x13a] sm:$0xff]
        %v552 = vld [vmem:[%s332 + $0x142] sm:$0xff]
        %v553 = vld [vmem:[%s332 + $0x152] sm:$0xff]
        %v554 = vld [vmem:[%s332 + $0x15a] sm:$0xff]
        %v555 = vld [vmem:[%s332 + $0x16a] sm:$0xff]
        %v556 = vld [vmem:[%s332 + $0x172] sm:$0xff]
        %s557 = scalar_lea.vmem [#allocation2], 48
        %v558 = vld [vmem:[%s557] sm:$0xff]
        %v559 = vld [vmem:[%s557 + $0x8] sm:$0xff]
        %v560 = vld [vmem:[%s557 + $0x18] sm:$0xff]
        %v561 = vld [vmem:[%s557 + $0x20] sm:$0xff]
        %v562 = vld [vmem:[%s557 + $0x30] sm:$0xff]
        %v563 = vld [vmem:[%s557 + $0x38] sm:$0xff]
        %v564 = vld [vmem:[%s557 + $0x48] sm:$0xff]
        %v565 = vld [vmem:[%s557 + $0x50] sm:$0xff]
        %v566 = vld [vmem:[%s557 + $0x60] sm:$0xff]
        %v567 = vld [vmem:[%s557 + $0x68] sm:$0xff]
        %v568 = vld [vmem:[%s557 + $0x78] sm:$0xff]
        %v569 = vld [vmem:[%s557 + $0x80] sm:$0xff]
        %v570 = vld [vmem:[%s557 + $0x90] sm:$0xff]
        %v571 = vld [vmem:[%s557 + $0x98] sm:$0xff]
        %v572 = vld [vmem:[%s557 + $0xa8] sm:$0xff]
        %v573 = vld [vmem:[%s557 + $0xb0] sm:$0xff]
        %v574 = vld [vmem:[%s557 + $0xc0] sm:$0xff]
        %v575 = vld [vmem:[%s557 + $0xc8] sm:$0xff]
        %v576 = vld [vmem:[%s557 + $0xd8] sm:$0xff]
        %v577 = vld [vmem:[%s557 + $0xe0] sm:$0xff]
        %v578 = vld [vmem:[%s557 + $0xf0] sm:$0xff]
        %v579 = vld [vmem:[%s557 + $0xf8] sm:$0xff]
        %v580 = vld [vmem:[%s557 + $0x108] sm:$0xff]
        %v581 = vld [vmem:[%s557 + $0x110] sm:$0xff]
        %v582 = vld [vmem:[%s557 + $0x120] sm:$0xff]
        %v583 = vld [vmem:[%s557 + $0x128] sm:$0xff]
        %v584 = vld [vmem:[%s557 + $0x138] sm:$0xff]
        %v585 = vld [vmem:[%s557 + $0x140] sm:$0xff]
        %v586 = vld [vmem:[%s557 + $0x150] sm:$0xff]
        %v587 = vld [vmem:[%s557 + $0x158] sm:$0xff]
        %v588 = vld [vmem:[%s557 + $0x168] sm:$0xff]
        %v589 = vld [vmem:[%s557 + $0x170] sm:$0xff]
        %v590 = vld [vmem:[%s557 + $0x1] sm:$0xff]
        %v591 = vld [vmem:[%s557 + $0x9] sm:$0xff]
        %v592 = vld [vmem:[%s557 + $0x19] sm:$0xff]
        %v593 = vld [vmem:[%s557 + $0x21] sm:$0xff]
        %v594 = vld [vmem:[%s557 + $0x31] sm:$0xff]
        %v595 = vld [vmem:[%s557 + $0x39] sm:$0xff]
        %v596 = vld [vmem:[%s557 + $0x49] sm:$0xff]
        %v597 = vld [vmem:[%s557 + $0x51] sm:$0xff]
        %v598 = vld [vmem:[%s557 + $0x61] sm:$0xff]
        %v599 = vld [vmem:[%s557 + $0x69] sm:$0xff]
        %v600 = vld [vmem:[%s557 + $0x79] sm:$0xff]
        %v601 = vld [vmem:[%s557 + $0x81] sm:$0xff]
        %v602 = vld [vmem:[%s557 + $0x91] sm:$0xff]
        %v603 = vld [vmem:[%s557 + $0x99] sm:$0xff]
        %v604 = vld [vmem:[%s557 + $0xa9] sm:$0xff]
        %v605 = vld [vmem:[%s557 + $0xb1] sm:$0xff]
        %v606 = vld [vmem:[%s557 + $0xc1] sm:$0xff]
        %v607 = vld [vmem:[%s557 + $0xc9] sm:$0xff]
        %v608 = vld [vmem:[%s557 + $0xd9] sm:$0xff]
        %v609 = vld [vmem:[%s557 + $0xe1] sm:$0xff]
        %v610 = vld [vmem:[%s557 + $0xf1] sm:$0xff]
        %v611 = vld [vmem:[%s557 + $0xf9] sm:$0xff]
        %v612 = vld [vmem:[%s557 + $0x109] sm:$0xff]
        %v613 = vld [vmem:[%s557 + $0x111] sm:$0xff]
        %v614 = vld [vmem:[%s557 + $0x121] sm:$0xff]
        %v615 = vld [vmem:[%s557 + $0x129] sm:$0xff]
        %v616 = vld [vmem:[%s557 + $0x139] sm:$0xff]
        %v617 = vld [vmem:[%s557 + $0x141] sm:$0xff]
        %v618 = vld [vmem:[%s557 + $0x151] sm:$0xff]
        %v619 = vld [vmem:[%s557 + $0x159] sm:$0xff]
        %v620 = vld [vmem:[%s557 + $0x169] sm:$0xff]
        %v621 = vld [vmem:[%s557 + $0x171] sm:$0xff]
        %v622 = vld [vmem:[%s557 + $0x2] sm:$0xff]
        %v623 = vld [vmem:[%s557 + $0xa] sm:$0xff]
        %v624 = vld [vmem:[%s557 + $0x1a] sm:$0xff]
        %v625 = vld [vmem:[%s557 + $0x22] sm:$0xff]
        %v626 = vld [vmem:[%s557 + $0x32] sm:$0xff]
        %v627 = vld [vmem:[%s557 + $0x3a] sm:$0xff]
        %v628 = vld [vmem:[%s557 + $0x4a] sm:$0xff]
        %v629 = vld [vmem:[%s557 + $0x52] sm:$0xff]
        %v630 = vld [vmem:[%s557 + $0x62] sm:$0xff]
        %v631 = vld [vmem:[%s557 + $0x6a] sm:$0xff]
        %v632 = vld [vmem:[%s557 + $0x7a] sm:$0xff]
        %v633 = vld [vmem:[%s557 + $0x82] sm:$0xff]
        %v634 = vld [vmem:[%s557 + $0x92] sm:$0xff]
        %v635 = vld [vmem:[%s557 + $0x9a] sm:$0xff]
        %v636 = vld [vmem:[%s557 + $0xaa] sm:$0xff]
        %v637 = vld [vmem:[%s557 + $0xb2] sm:$0xff]
        %v638 = vld [vmem:[%s557 + $0xc2] sm:$0xff]
        %v639 = vld [vmem:[%s557 + $0xca] sm:$0xff]
        %v640 = vld [vmem:[%s557 + $0xda] sm:$0xff]
        %v641 = vld [vmem:[%s557 + $0xe2] sm:$0xff]
        %v642 = vld [vmem:[%s557 + $0xf2] sm:$0xff]
        %v643 = vld [vmem:[%s557 + $0xfa] sm:$0xff]
        %v644 = vld [vmem:[%s557 + $0x10a] sm:$0xff]
        %v645 = vld [vmem:[%s557 + $0x112] sm:$0xff]
        %v646 = vld [vmem:[%s557 + $0x122] sm:$0xff]
        %v647 = vld [vmem:[%s557 + $0x12a] sm:$0xff]
        %v648 = vld [vmem:[%s557 + $0x13a] sm:$0xff]
        %v649 = vld [vmem:[%s557 + $0x142] sm:$0xff]
        %v650 = vld [vmem:[%s557 + $0x152] sm:$0xff]
        %v651 = vld [vmem:[%s557 + $0x15a] sm:$0xff]
        %v652 = vld [vmem:[%s557 + $0x16a] sm:$0xff]
        %v653 = vld [vmem:[%s557 + $0x172] sm:$0xff]
        %686 = vrot.lane.b32.xlu0 %v397, 4
        %v687 = vpop.permute.xlu0 %686
        %688 = vrot.lane.b32.xlu0 %v398, 4
        %v689 = vpop.permute.xlu0 %688
        %690 = vrot.lane.b32.xlu0 %v399, 4
        %v691 = vpop.permute.xlu0 %690
        %692 = vrot.lane.b32.xlu0 %v400, 4
        %v693 = vpop.permute.xlu0 %692
        %694 = vrot.lane.b32.xlu0 %v401, 4
        %v695 = vpop.permute.xlu0 %694
        %696 = vrot.lane.b32.xlu0 %v402, 4
        %v697 = vpop.permute.xlu0 %696
        %698 = vrot.lane.b32.xlu0 %v403, 4
        %v699 = vpop.permute.xlu0 %698
        %700 = vrot.lane.b32.xlu0 %v404, 4
        %v701 = vpop.permute.xlu0 %700
        %702 = vrot.lane.b32.xlu0 %v405, 4
        %v703 = vpop.permute.xlu0 %702
        %704 = vrot.lane.b32.xlu0 %v406, 4
        %v705 = vpop.permute.xlu0 %704
        %706 = vrot.lane.b32.xlu0 %v407, 4
        %v707 = vpop.permute.xlu0 %706
        %708 = vrot.lane.b32.xlu0 %v408, 4
        %v709 = vpop.permute.xlu0 %708
        %710 = vrot.lane.b32.xlu0 %v409, 4
        %v711 = vpop.permute.xlu0 %710
        %712 = vrot.lane.b32.xlu0 %v410, 4
        %v713 = vpop.permute.xlu0 %712
        %714 = vrot.lane.b32.xlu0 %v411, 4
        %v715 = vpop.permute.xlu0 %714
        %716 = vrot.lane.b32.xlu0 %v412, 4
        %v717 = vpop.permute.xlu0 %716
        %718 = vrot.lane.b32.xlu0 %v413, 4
        %v719 = vpop.permute.xlu0 %718
        %720 = vrot.lane.b32.xlu0 %v414, 4
        %v721 = vpop.permute.xlu0 %720
        %722 = vrot.lane.b32.xlu0 %v415, 4
        %v723 = vpop.permute.xlu0 %722
        %724 = vrot.lane.b32.xlu0 %v416, 4
        %v725 = vpop.permute.xlu0 %724
        %726 = vrot.lane.b32.xlu0 %v417, 4
        %v727 = vpop.permute.xlu0 %726
        %728 = vrot.lane.b32.xlu0 %v418, 4
        %v729 = vpop.permute.xlu0 %728
        %730 = vrot.lane.b32.xlu0 %v419, 4
        %v731 = vpop.permute.xlu0 %730
        %732 = vrot.lane.b32.xlu0 %v420, 4
        %v733 = vpop.permute.xlu0 %732
        %734 = vrot.lane.b32.xlu0 %v421, 4
        %v735 = vpop.permute.xlu0 %734
        %736 = vrot.lane.b32.xlu0 %v422, 4
        %v737 = vpop.permute.xlu0 %736
        %738 = vrot.lane.b32.xlu0 %v423, 4
        %v739 = vpop.permute.xlu0 %738
        %740 = vrot.lane.b32.xlu0 %v424, 4
        %v741 = vpop.permute.xlu0 %740
        %742 = vrot.lane.b32.xlu0 %v425, 4
        %v743 = vpop.permute.xlu0 %742
        %744 = vrot.lane.b32.xlu0 %v426, 4
        %v745 = vpop.permute.xlu0 %744
        %746 = vrot.lane.b32.xlu0 %v427, 4
        %v747 = vpop.permute.xlu0 %746
        %748 = vrot.lane.b32.xlu0 %v428, 4
        %v749 = vpop.permute.xlu0 %748
        %814 = vrot.lane.b32.xlu0 %v429, 8
        %v815 = vpop.permute.xlu0 %814
        %816 = vrot.lane.b32.xlu0 %v430, 8
        %v817 = vpop.permute.xlu0 %816
        %818 = vrot.lane.b32.xlu0 %v431, 8
        %v819 = vpop.permute.xlu0 %818
        %820 = vrot.lane.b32.xlu0 %v432, 8
        %v821 = vpop.permute.xlu0 %820
        %822 = vrot.lane.b32.xlu0 %v433, 8
        %v823 = vpop.permute.xlu0 %822
        %824 = vrot.lane.b32.xlu0 %v434, 8
        %v825 = vpop.permute.xlu0 %824
        %826 = vrot.lane.b32.xlu0 %v435, 8
        %v827 = vpop.permute.xlu0 %826
        %828 = vrot.lane.b32.xlu0 %v436, 8
        %v829 = vpop.permute.xlu0 %828
        %830 = vrot.lane.b32.xlu0 %v437, 8
        %v831 = vpop.permute.xlu0 %830
        %832 = vrot.lane.b32.xlu0 %v438, 8
        %v833 = vpop.permute.xlu0 %832
        %834 = vrot.lane.b32.xlu0 %v439, 8
        %v835 = vpop.permute.xlu0 %834
        %836 = vrot.lane.b32.xlu0 %v440, 8
        %v837 = vpop.permute.xlu0 %836
        %838 = vrot.lane.b32.xlu0 %v441, 8
        %v839 = vpop.permute.xlu0 %838
        %840 = vrot.lane.b32.xlu0 %v442, 8
        %v841 = vpop.permute.xlu0 %840
        %842 = vrot.lane.b32.xlu0 %v443, 8
        %v843 = vpop.permute.xlu0 %842
        %844 = vrot.lane.b32.xlu0 %v444, 8
        %v845 = vpop.permute.xlu0 %844
        %846 = vrot.lane.b32.xlu0 %v445, 8
        %v847 = vpop.permute.xlu0 %846
        %848 = vrot.lane.b32.xlu0 %v446, 8
        %v849 = vpop.permute.xlu0 %848
        %850 = vrot.lane.b32.xlu0 %v447, 8
        %v851 = vpop.permute.xlu0 %850
        %852 = vrot.lane.b32.xlu0 %v448, 8
        %v853 = vpop.permute.xlu0 %852
        %854 = vrot.lane.b32.xlu0 %v449, 8
        %v855 = vpop.permute.xlu0 %854
        %856 = vrot.lane.b32.xlu0 %v450, 8
        %v857 = vpop.permute.xlu0 %856
        %858 = vrot.lane.b32.xlu0 %v451, 8
        %v859 = vpop.permute.xlu0 %858
        %860 = vrot.lane.b32.xlu0 %v452, 8
        %v861 = vpop.permute.xlu0 %860
        %862 = vrot.lane.b32.xlu0 %v453, 8
        %v863 = vpop.permute.xlu0 %862
        %864 = vrot.lane.b32.xlu0 %v454, 8
        %v865 = vpop.permute.xlu0 %864
        %866 = vrot.lane.b32.xlu0 %v455, 8
        %v867 = vpop.permute.xlu0 %866
        %868 = vrot.lane.b32.xlu0 %v456, 8
        %v869 = vpop.permute.xlu0 %868
        %870 = vrot.lane.b32.xlu0 %v457, 8
        %v871 = vpop.permute.xlu0 %870
        %872 = vrot.lane.b32.xlu0 %v458, 8
        %v873 = vpop.permute.xlu0 %872
        %874 = vrot.lane.b32.xlu0 %v459, 8
        %v875 = vpop.permute.xlu0 %874
        %876 = vrot.lane.b32.xlu0 %v460, 8
        %v877 = vpop.permute.xlu0 %876
        %942 = vrot.lane.b32.xlu0 %v461, 12
        %v943 = vpop.permute.xlu0 %942
        %944 = vrot.lane.b32.xlu0 %v462, 12
        %v945 = vpop.permute.xlu0 %944
        %946 = vrot.lane.b32.xlu0 %v463, 12
        %v947 = vpop.permute.xlu0 %946
        %948 = vrot.lane.b32.xlu0 %v464, 12
        %v949 = vpop.permute.xlu0 %948
        %950 = vrot.lane.b32.xlu0 %v465, 12
        %v951 = vpop.permute.xlu0 %950
        %952 = vrot.lane.b32.xlu0 %v466, 12
        %v953 = vpop.permute.xlu0 %952
        %954 = vrot.lane.b32.xlu0 %v467, 12
        %v955 = vpop.permute.xlu0 %954
        %956 = vrot.lane.b32.xlu0 %v468, 12
        %v957 = vpop.permute.xlu0 %956
        %958 = vrot.lane.b32.xlu0 %v469, 12
        %v959 = vpop.permute.xlu0 %958
        %960 = vrot.lane.b32.xlu0 %v470, 12
        %v961 = vpop.permute.xlu0 %960
        %962 = vrot.lane.b32.xlu0 %v471, 12
        %v963 = vpop.permute.xlu0 %962
        %964 = vrot.lane.b32.xlu0 %v472, 12
        %v965 = vpop.permute.xlu0 %964
        %966 = vrot.lane.b32.xlu0 %v473, 12
        %v967 = vpop.permute.xlu0 %966
        %968 = vrot.lane.b32.xlu0 %v474, 12
        %v969 = vpop.permute.xlu0 %968
        %970 = vrot.lane.b32.xlu0 %v475, 12
        %v971 = vpop.permute.xlu0 %970
        %972 = vrot.lane.b32.xlu0 %v476, 12
        %v973 = vpop.permute.xlu0 %972
        %974 = vrot.lane.b32.xlu0 %v477, 12
        %v975 = vpop.permute.xlu0 %974
        %976 = vrot.lane.b32.xlu0 %v478, 12
        %v977 = vpop.permute.xlu0 %976
        %978 = vrot.lane.b32.xlu0 %v479, 12
        %v979 = vpop.permute.xlu0 %978
        %980 = vrot.lane.b32.xlu0 %v480, 12
        %v981 = vpop.permute.xlu0 %980
        %982 = vrot.lane.b32.xlu0 %v481, 12
        %v983 = vpop.permute.xlu0 %982
        %984 = vrot.lane.b32.xlu0 %v482, 12
        %v985 = vpop.permute.xlu0 %984
        %986 = vrot.lane.b32.xlu0 %v483, 12
        %v987 = vpop.permute.xlu0 %986
        %988 = vrot.lane.b32.xlu0 %v484, 12
        %v989 = vpop.permute.xlu0 %988
        %990 = vrot.lane.b32.xlu0 %v485, 12
        %v991 = vpop.permute.xlu0 %990
        %992 = vrot.lane.b32.xlu0 %v486, 12
        %v993 = vpop.permute.xlu0 %992
        %994 = vrot.lane.b32.xlu0 %v487, 12
        %v995 = vpop.permute.xlu0 %994
        %996 = vrot.lane.b32.xlu0 %v488, 12
        %v997 = vpop.permute.xlu0 %996
        %998 = vrot.lane.b32.xlu0 %v489, 12
        %v999 = vpop.permute.xlu0 %998
        %1000 = vrot.lane.b32.xlu0 %v490, 12
        %v1001 = vpop.permute.xlu0 %1000
        %1002 = vrot.lane.b32.xlu0 %v491, 12
        %v1003 = vpop.permute.xlu0 %1002
        %1004 = vrot.lane.b32.xlu0 %v492, 12
        %v1005 = vpop.permute.xlu0 %1004
        %1070 = vrot.lane.b32.xlu0 %v493, 16
        %v1071 = vpop.permute.xlu0 %1070
        %1072 = vrot.lane.b32.xlu0 %v494, 16
        %v1073 = vpop.permute.xlu0 %1072
        %1074 = vrot.lane.b32.xlu0 %v495, 16
        %v1075 = vpop.permute.xlu0 %1074
        %1076 = vrot.lane.b32.xlu0 %v496, 16
        %v1077 = vpop.permute.xlu0 %1076
        %1078 = vrot.lane.b32.xlu0 %v497, 16
        %v1079 = vpop.permute.xlu0 %1078
        %1080 = vrot.lane.b32.xlu0 %v498, 16
        %v1081 = vpop.permute.xlu0 %1080
        %1082 = vrot.lane.b32.xlu0 %v499, 16
        %v1083 = vpop.permute.xlu0 %1082
        %1084 = vrot.lane.b32.xlu0 %v500, 16
        %v1085 = vpop.permute.xlu0 %1084
        %1086 = vrot.lane.b32.xlu0 %v501, 16
        %v1087 = vpop.permute.xlu0 %1086
        %1088 = vrot.lane.b32.xlu0 %v502, 16
        %v1089 = vpop.permute.xlu0 %1088
        %1090 = vrot.lane.b32.xlu0 %v503, 16
        %v1091 = vpop.permute.xlu0 %1090
        %1092 = vrot.lane.b32.xlu0 %v504, 16
        %v1093 = vpop.permute.xlu0 %1092
        %1094 = vrot.lane.b32.xlu0 %v505, 16
        %v1095 = vpop.permute.xlu0 %1094
        %1096 = vrot.lane.b32.xlu0 %v506, 16
        %v1097 = vpop.permute.xlu0 %1096
        %1098 = vrot.lane.b32.xlu0 %v507, 16
        %v1099 = vpop.permute.xlu0 %1098
        %1100 = vrot.lane.b32.xlu0 %v508, 16
        %v1101 = vpop.permute.xlu0 %1100
        %1102 = vrot.lane.b32.xlu0 %v509, 16
        %v1103 = vpop.permute.xlu0 %1102
        %1104 = vrot.lane.b32.xlu0 %v510, 16
        %v1105 = vpop.permute.xlu0 %1104
        %1106 = vrot.lane.b32.xlu0 %v511, 16
        %v1107 = vpop.permute.xlu0 %1106
        %1108 = vrot.lane.b32.xlu0 %v512, 16
        %v1109 = vpop.permute.xlu0 %1108
        %1110 = vrot.lane.b32.xlu0 %v513, 16
        %v1111 = vpop.permute.xlu0 %1110
        %1112 = vrot.lane.b32.xlu0 %v514, 16
        %v1113 = vpop.permute.xlu0 %1112
        %1114 = vrot.lane.b32.xlu0 %v515, 16
        %v1115 = vpop.permute.xlu0 %1114
        %1116 = vrot.lane.b32.xlu0 %v516, 16
        %v1117 = vpop.permute.xlu0 %1116
        %1118 = vrot.lane.b32.xlu0 %v517, 16
        %v1119 = vpop.permute.xlu0 %1118
        %1120 = vrot.lane.b32.xlu0 %v518, 16
        %v1121 = vpop.permute.xlu0 %1120
        %1122 = vrot.lane.b32.xlu0 %v519, 16
        %v1123 = vpop.permute.xlu0 %1122
        %1124 = vrot.lane.b32.xlu0 %v520, 16
        %v1125 = vpop.permute.xlu0 %1124
        %1126 = vrot.lane.b32.xlu0 %v521, 16
        %v1127 = vpop.permute.xlu0 %1126
        %1128 = vrot.lane.b32.xlu0 %v522, 16
        %v1129 = vpop.permute.xlu0 %1128
        %1130 = vrot.lane.b32.xlu0 %v523, 16
        %v1131 = vpop.permute.xlu0 %1130
        %1132 = vrot.lane.b32.xlu0 %v524, 16
        %v1133 = vpop.permute.xlu0 %1132
        %1198 = vrot.lane.b32.xlu0 %v525, 20
        %v1199 = vpop.permute.xlu0 %1198
        %1200 = vrot.lane.b32.xlu0 %v526, 20
        %v1201 = vpop.permute.xlu0 %1200
        %1202 = vrot.lane.b32.xlu0 %v527, 20
        %v1203 = vpop.permute.xlu0 %1202
        %1204 = vrot.lane.b32.xlu0 %v528, 20
        %v1205 = vpop.permute.xlu0 %1204
        %1206 = vrot.lane.b32.xlu0 %v529, 20
        %v1207 = vpop.permute.xlu0 %1206
        %1208 = vrot.lane.b32.xlu0 %v530, 20
        %v1209 = vpop.permute.xlu0 %1208
        %1210 = vrot.lane.b32.xlu0 %v531, 20
        %v1211 = vpop.permute.xlu0 %1210
        %1212 = vrot.lane.b32.xlu0 %v532, 20
        %v1213 = vpop.permute.xlu0 %1212
        %1214 = vrot.lane.b32.xlu0 %v533, 20
        %v1215 = vpop.permute.xlu0 %1214
        %1216 = vrot.lane.b32.xlu0 %v534, 20
        %v1217 = vpop.permute.xlu0 %1216
        %1218 = vrot.lane.b32.xlu0 %v535, 20
        %v1219 = vpop.permute.xlu0 %1218
        %1220 = vrot.lane.b32.xlu0 %v536, 20
        %v1221 = vpop.permute.xlu0 %1220
        %1222 = vrot.lane.b32.xlu0 %v537, 20
        %v1223 = vpop.permute.xlu0 %1222
        %1224 = vrot.lane.b32.xlu0 %v538, 20
        %v1225 = vpop.permute.xlu0 %1224
        %1226 = vrot.lane.b32.xlu0 %v539, 20
        %v1227 = vpop.permute.xlu0 %1226
        %1228 = vrot.lane.b32.xlu0 %v540, 20
        %v1229 = vpop.permute.xlu0 %1228
        %1230 = vrot.lane.b32.xlu0 %v541, 20
        %v1231 = vpop.permute.xlu0 %1230
        %1232 = vrot.lane.b32.xlu0 %v542, 20
        %v1233 = vpop.permute.xlu0 %1232
        %1234 = vrot.lane.b32.xlu0 %v543, 20
        %v1235 = vpop.permute.xlu0 %1234
        %1236 = vrot.lane.b32.xlu0 %v544, 20
        %v1237 = vpop.permute.xlu0 %1236
        %1238 = vrot.lane.b32.xlu0 %v545, 20
        %v1239 = vpop.permute.xlu0 %1238
        %1240 = vrot.lane.b32.xlu0 %v546, 20
        %v1241 = vpop.permute.xlu0 %1240
        %1242 = vrot.lane.b32.xlu0 %v547, 20
        %v1243 = vpop.permute.xlu0 %1242
        %1244 = vrot.lane.b32.xlu0 %v548, 20
        %v1245 = vpop.permute.xlu0 %1244
        %1246 = vrot.lane.b32.xlu0 %v549, 20
        %v1247 = vpop.permute.xlu0 %1246
        %1248 = vrot.lane.b32.xlu0 %v550, 20
        %v1249 = vpop.permute.xlu0 %1248
        %1250 = vrot.lane.b32.xlu0 %v551, 20
        %v1251 = vpop.permute.xlu0 %1250
        %1252 = vrot.lane.b32.xlu0 %v552, 20
        %v1253 = vpop.permute.xlu0 %1252
        %1254 = vrot.lane.b32.xlu0 %v553, 20
        %v1255 = vpop.permute.xlu0 %1254
        %1256 = vrot.lane.b32.xlu0 %v554, 20
        %v1257 = vpop.permute.xlu0 %1256
        %1258 = vrot.lane.b32.xlu0 %v555, 20
        %v1259 = vpop.permute.xlu0 %1258
        %1260 = vrot.lane.b32.xlu0 %v556, 20
        %v1261 = vpop.permute.xlu0 %1260
        %1326 = vrot.lane.b32.xlu0 %v558, 24
        %v1327 = vpop.permute.xlu0 %1326
        %1328 = vrot.lane.b32.xlu0 %v559, 24
        %v1329 = vpop.permute.xlu0 %1328
        %1330 = vrot.lane.b32.xlu0 %v560, 24
        %v1331 = vpop.permute.xlu0 %1330
        %1332 = vrot.lane.b32.xlu0 %v561, 24
        %v1333 = vpop.permute.xlu0 %1332
        %1334 = vrot.lane.b32.xlu0 %v562, 24
        %v1335 = vpop.permute.xlu0 %1334
        %1336 = vrot.lane.b32.xlu0 %v563, 24
        %v1337 = vpop.permute.xlu0 %1336
        %1338 = vrot.lane.b32.xlu0 %v564, 24
        %v1339 = vpop.permute.xlu0 %1338
        %1340 = vrot.lane.b32.xlu0 %v565, 24
        %v1341 = vpop.permute.xlu0 %1340
        %1342 = vrot.lane.b32.xlu0 %v566, 24
        %v1343 = vpop.permute.xlu0 %1342
        %1344 = vrot.lane.b32.xlu0 %v567, 24
        %v1345 = vpop.permute.xlu0 %1344
        %1346 = vrot.lane.b32.xlu0 %v568, 24
        %v1347 = vpop.permute.xlu0 %1346
        %1348 = vrot.lane.b32.xlu0 %v569, 24
        %v1349 = vpop.permute.xlu0 %1348
        %1350 = vrot.lane.b32.xlu0 %v570, 24
        %v1351 = vpop.permute.xlu0 %1350
        %1352 = vrot.lane.b32.xlu0 %v571, 24
        %v1353 = vpop.permute.xlu0 %1352
        %1354 = vrot.lane.b32.xlu0 %v572, 24
        %v1355 = vpop.permute.xlu0 %1354
        %1356 = vrot.lane.b32.xlu0 %v573, 24
        %v1357 = vpop.permute.xlu0 %1356
        %1358 = vrot.lane.b32.xlu0 %v574, 24
        %v1359 = vpop.permute.xlu0 %1358
        %1360 = vrot.lane.b32.xlu0 %v575, 24
        %v1361 = vpop.permute.xlu0 %1360
        %1362 = vrot.lane.b32.xlu0 %v576, 24
        %v1363 = vpop.permute.xlu0 %1362
        %1364 = vrot.lane.b32.xlu0 %v577, 24
        %v1365 = vpop.permute.xlu0 %1364
        %1366 = vrot.lane.b32.xlu0 %v578, 24
        %v1367 = vpop.permute.xlu0 %1366
        %1368 = vrot.lane.b32.xlu0 %v579, 24
        %v1369 = vpop.permute.xlu0 %1368
        %1370 = vrot.lane.b32.xlu0 %v580, 24
        %v1371 = vpop.permute.xlu0 %1370
        %1372 = vrot.lane.b32.xlu0 %v581, 24
        %v1373 = vpop.permute.xlu0 %1372
        %1374 = vrot.lane.b32.xlu0 %v582, 24
        %v1375 = vpop.permute.xlu0 %1374
        %1376 = vrot.lane.b32.xlu0 %v583, 24
        %v1377 = vpop.permute.xlu0 %1376
        %1378 = vrot.lane.b32.xlu0 %v584, 24
        %v1379 = vpop.permute.xlu0 %1378
        %1380 = vrot.lane.b32.xlu0 %v585, 24
        %v1381 = vpop.permute.xlu0 %1380
        %1382 = vrot.lane.b32.xlu0 %v586, 24
        %v1383 = vpop.permute.xlu0 %1382
        %1384 = vrot.lane.b32.xlu0 %v587, 24
        %v1385 = vpop.permute.xlu0 %1384
        %1386 = vrot.lane.b32.xlu0 %v588, 24
        %v1387 = vpop.permute.xlu0 %1386
        %1388 = vrot.lane.b32.xlu0 %v589, 24
        %v1389 = vpop.permute.xlu0 %1388
        %1454 = vrot.lane.b32.xlu0 %v590, 28
        %v1455 = vpop.permute.xlu0 %1454
        %1456 = vrot.lane.b32.xlu0 %v591, 28
        %v1457 = vpop.permute.xlu0 %1456
        %1458 = vrot.lane.b32.xlu0 %v592, 28
        %v1459 = vpop.permute.xlu0 %1458
        %1460 = vrot.lane.b32.xlu0 %v593, 28
        %v1461 = vpop.permute.xlu0 %1460
        %1462 = vrot.lane.b32.xlu0 %v594, 28
        %v1463 = vpop.permute.xlu0 %1462
        %1464 = vrot.lane.b32.xlu0 %v595, 28
        %v1465 = vpop.permute.xlu0 %1464
        %1466 = vrot.lane.b32.xlu0 %v596, 28
        %v1467 = vpop.permute.xlu0 %1466
        %1468 = vrot.lane.b32.xlu0 %v597, 28
        %v1469 = vpop.permute.xlu0 %1468
        %1470 = vrot.lane.b32.xlu0 %v598, 28
        %v1471 = vpop.permute.xlu0 %1470
        %1472 = vrot.lane.b32.xlu0 %v599, 28
        %v1473 = vpop.permute.xlu0 %1472
        %1474 = vrot.lane.b32.xlu0 %v600, 28
        %v1475 = vpop.permute.xlu0 %1474
        %1476 = vrot.lane.b32.xlu0 %v601, 28
        %v1477 = vpop.permute.xlu0 %1476
        %1478 = vrot.lane.b32.xlu0 %v602, 28
        %v1479 = vpop.permute.xlu0 %1478
        %1480 = vrot.lane.b32.xlu0 %v603, 28
        %v1481 = vpop.permute.xlu0 %1480
        %1482 = vrot.lane.b32.xlu0 %v604, 28
        %v1483 = vpop.permute.xlu0 %1482
        %1484 = vrot.lane.b32.xlu0 %v605, 28
        %v1485 = vpop.permute.xlu0 %1484
        %1486 = vrot.lane.b32.xlu0 %v606, 28
        %v1487 = vpop.permute.xlu0 %1486
        %1488 = vrot.lane.b32.xlu0 %v607, 28
        %v1489 = vpop.permute.xlu0 %1488
        %1490 = vrot.lane.b32.xlu0 %v608, 28
        %v1491 = vpop.permute.xlu0 %1490
        %1492 = vrot.lane.b32.xlu0 %v609, 28
        %v1493 = vpop.permute.xlu0 %1492
        %1494 = vrot.lane.b32.xlu0 %v610, 28
        %v1495 = vpop.permute.xlu0 %1494
        %1496 = vrot.lane.b32.xlu0 %v611, 28
        %v1497 = vpop.permute.xlu0 %1496
        %1498 = vrot.lane.b32.xlu0 %v612, 28
        %v1499 = vpop.permute.xlu0 %1498
        %1500 = vrot.lane.b32.xlu0 %v613, 28
        %v1501 = vpop.permute.xlu0 %1500
        %1502 = vrot.lane.b32.xlu0 %v614, 28
        %v1503 = vpop.permute.xlu0 %1502
        %1504 = vrot.lane.b32.xlu0 %v615, 28
        %v1505 = vpop.permute.xlu0 %1504
        %1506 = vrot.lane.b32.xlu0 %v616, 28
        %v1507 = vpop.permute.xlu0 %1506
        %1508 = vrot.lane.b32.xlu0 %v617, 28
        %v1509 = vpop.permute.xlu0 %1508
        %1510 = vrot.lane.b32.xlu0 %v618, 28
        %v1511 = vpop.permute.xlu0 %1510
        %1512 = vrot.lane.b32.xlu0 %v619, 28
        %v1513 = vpop.permute.xlu0 %1512
        %1514 = vrot.lane.b32.xlu0 %v620, 28
        %v1515 = vpop.permute.xlu0 %1514
        %1516 = vrot.lane.b32.xlu0 %v621, 28
        %v1517 = vpop.permute.xlu0 %1516
        %1582 = vrot.lane.b32.xlu0 %v622, 32
        %v1583 = vpop.permute.xlu0 %1582
        %1584 = vrot.lane.b32.xlu0 %v623, 32
        %v1585 = vpop.permute.xlu0 %1584
        %1586 = vrot.lane.b32.xlu0 %v624, 32
        %v1587 = vpop.permute.xlu0 %1586
        %1588 = vrot.lane.b32.xlu0 %v625, 32
        %v1589 = vpop.permute.xlu0 %1588
        %1590 = vrot.lane.b32.xlu0 %v626, 32
        %v1591 = vpop.permute.xlu0 %1590
        %1592 = vrot.lane.b32.xlu0 %v627, 32
        %v1593 = vpop.permute.xlu0 %1592
        %1594 = vrot.lane.b32.xlu0 %v628, 32
        %v1595 = vpop.permute.xlu0 %1594
        %1596 = vrot.lane.b32.xlu0 %v629, 32
        %v1597 = vpop.permute.xlu0 %1596
        %1598 = vrot.lane.b32.xlu0 %v630, 32
        %v1599 = vpop.permute.xlu0 %1598
        %1600 = vrot.lane.b32.xlu0 %v631, 32
        %v1601 = vpop.permute.xlu0 %1600
        %1602 = vrot.lane.b32.xlu0 %v632, 32
        %v1603 = vpop.permute.xlu0 %1602
        %1604 = vrot.lane.b32.xlu0 %v633, 32
        %v1605 = vpop.permute.xlu0 %1604
        %1606 = vrot.lane.b32.xlu0 %v634, 32
        %v1607 = vpop.permute.xlu0 %1606
        %1608 = vrot.lane.b32.xlu0 %v635, 32
        %v1609 = vpop.permute.xlu0 %1608
        %1610 = vrot.lane.b32.xlu0 %v636, 32
        %v1611 = vpop.permute.xlu0 %1610
        %1612 = vrot.lane.b32.xlu0 %v637, 32
        %v1613 = vpop.permute.xlu0 %1612
        %1614 = vrot.lane.b32.xlu0 %v638, 32
        %v1615 = vpop.permute.xlu0 %1614
        %1616 = vrot.lane.b32.xlu0 %v639, 32
        %v1617 = vpop.permute.xlu0 %1616
        %1618 = vrot.lane.b32.xlu0 %v640, 32
        %v1619 = vpop.permute.xlu0 %1618
        %1620 = vrot.lane.b32.xlu0 %v641, 32
        %v1621 = vpop.permute.xlu0 %1620
        %1622 = vrot.lane.b32.xlu0 %v642, 32
        %v1623 = vpop.permute.xlu0 %1622
        %1624 = vrot.lane.b32.xlu0 %v643, 32
        %v1625 = vpop.permute.xlu0 %1624
        %1626 = vrot.lane.b32.xlu0 %v644, 32
        %v1627 = vpop.permute.xlu0 %1626
        %1628 = vrot.lane.b32.xlu0 %v645, 32
        %v1629 = vpop.permute.xlu0 %1628
        %1630 = vrot.lane.b32.xlu0 %v646, 32
        %v1631 = vpop.permute.xlu0 %1630
        %1632 = vrot.lane.b32.xlu0 %v647, 32
        %v1633 = vpop.permute.xlu0 %1632
        %1634 = vrot.lane.b32.xlu0 %v648, 32
        %v1635 = vpop.permute.xlu0 %1634
        %1636 = vrot.lane.b32.xlu0 %v649, 32
        %v1637 = vpop.permute.xlu0 %1636
        %1638 = vrot.lane.b32.xlu0 %v650, 32
        %v1639 = vpop.permute.xlu0 %1638
        %1640 = vrot.lane.b32.xlu0 %v651, 32
        %v1641 = vpop.permute.xlu0 %1640
        %1642 = vrot.lane.b32.xlu0 %v652, 32
        %v1643 = vpop.permute.xlu0 %1642
        %1644 = vrot.lane.b32.xlu0 %v653, 32
        %v1645 = vpop.permute.xlu0 %1644
        %v1678 = vsel %vm244, %v365, %v687
        %v1679 = vsel %vm244, %v366, %v689
        %v1680 = vsel %vm244, %v367, %v691
        %v1681 = vsel %vm244, %v368, %v693
        %v1682 = vsel %vm244, %v369, %v695
        %v1683 = vsel %vm244, %v370, %v697
        %v1684 = vsel %vm244, %v371, %v699
        %v1685 = vsel %vm244, %v372, %v701
        %v1686 = vsel %vm244, %v373, %v703
        %v1687 = vsel %vm244, %v374, %v705
        %v1688 = vsel %vm244, %v375, %v707
        %v1689 = vsel %vm244, %v376, %v709
        %v1690 = vsel %vm244, %v377, %v711
        %v1691 = vsel %vm244, %v378, %v713
        %v1692 = vsel %vm244, %v379, %v715
        %v1693 = vsel %vm244, %v380, %v717
        %v1694 = vsel %vm244, %v381, %v719
        %v1695 = vsel %vm244, %v382, %v721
        %v1696 = vsel %vm244, %v383, %v723
        %v1697 = vsel %vm244, %v384, %v725
        %v1698 = vsel %vm244, %v385, %v727
        %v1699 = vsel %vm244, %v386, %v729
        %v1700 = vsel %vm244, %v387, %v731
        %v1701 = vsel %vm244, %v388, %v733
        %v1702 = vsel %vm244, %v389, %v735
        %v1703 = vsel %vm244, %v390, %v737
        %v1704 = vsel %vm244, %v391, %v739
        %v1705 = vsel %vm244, %v392, %v741
        %v1706 = vsel %vm244, %v393, %v743
        %v1707 = vsel %vm244, %v394, %v745
        %v1708 = vsel %vm244, %v395, %v747
        %v1709 = vsel %vm244, %v396, %v749
        %vm1710 = vcmask 64512
        %v1711 = vsel %vm1710, %v1678, %v815
        %v1712 = vsel %vm1710, %v1679, %v817
        %v1713 = vsel %vm1710, %v1680, %v819
        %v1714 = vsel %vm1710, %v1681, %v821
        %v1715 = vsel %vm1710, %v1682, %v823
        %v1716 = vsel %vm1710, %v1683, %v825
        %v1717 = vsel %vm1710, %v1684, %v827
        %v1718 = vsel %vm1710, %v1685, %v829
        %v1719 = vsel %vm1710, %v1686, %v831
        %v1720 = vsel %vm1710, %v1687, %v833
        %v1721 = vsel %vm1710, %v1688, %v835
        %v1722 = vsel %vm1710, %v1689, %v837
        %v1723 = vsel %vm1710, %v1690, %v839
        %v1724 = vsel %vm1710, %v1691, %v841
        %v1725 = vsel %vm1710, %v1692, %v843
        %v1726 = vsel %vm1710, %v1693, %v845
        %v1727 = vsel %vm1710, %v1694, %v847
        %v1728 = vsel %vm1710, %v1695, %v849
        %v1729 = vsel %vm1710, %v1696, %v851
        %v1730 = vsel %vm1710, %v1697, %v853
        %v1731 = vsel %vm1710, %v1698, %v855
        %v1732 = vsel %vm1710, %v1699, %v857
        %v1733 = vsel %vm1710, %v1700, %v859
        %v1734 = vsel %vm1710, %v1701, %v861
        %v1735 = vsel %vm1710, %v1702, %v863
        %v1736 = vsel %vm1710, %v1703, %v865
        %v1737 = vsel %vm1710, %v1704, %v867
        %v1738 = vsel %vm1710, %v1705, %v869
        %v1739 = vsel %vm1710, %v1706, %v871
        %v1740 = vsel %vm1710, %v1707, %v873
        %v1741 = vsel %vm1710, %v1708, %v875
        %v1742 = vsel %vm1710, %v1709, %v877
        %vm1743 = vcmask 97280
        %v1744 = vsel %vm1743, %v1711, %v943
        %v1745 = vsel %vm1743, %v1712, %v945
        %v1746 = vsel %vm1743, %v1713, %v947
        %v1747 = vsel %vm1743, %v1714, %v949
        %v1748 = vsel %vm1743, %v1715, %v951
        %v1749 = vsel %vm1743, %v1716, %v953
        %v1750 = vsel %vm1743, %v1717, %v955
        %v1751 = vsel %vm1743, %v1718, %v957
        %v1752 = vsel %vm1743, %v1719, %v959
        %v1753 = vsel %vm1743, %v1720, %v961
        %v1754 = vsel %vm1743, %v1721, %v963
        %v1755 = vsel %vm1743, %v1722, %v965
        %v1756 = vsel %vm1743, %v1723, %v967
        %v1757 = vsel %vm1743, %v1724, %v969
        %v1758 = vsel %vm1743, %v1725, %v971
        %v1759 = vsel %vm1743, %v1726, %v973
        %v1760 = vsel %vm1743, %v1727, %v975
        %v1761 = vsel %vm1743, %v1728, %v977
        %v1762 = vsel %vm1743, %v1729, %v979
        %v1763 = vsel %vm1743, %v1730, %v981
        %v1764 = vsel %vm1743, %v1731, %v983
        %v1765 = vsel %vm1743, %v1732, %v985
        %v1766 = vsel %vm1743, %v1733, %v987
        %v1767 = vsel %vm1743, %v1734, %v989
        %v1768 = vsel %vm1743, %v1735, %v991
        %v1769 = vsel %vm1743, %v1736, %v993
        %v1770 = vsel %vm1743, %v1737, %v995
        %v1771 = vsel %vm1743, %v1738, %v997
        %v1772 = vsel %vm1743, %v1739, %v999
        %v1773 = vsel %vm1743, %v1740, %v1001
        %v1774 = vsel %vm1743, %v1741, %v1003
        %v1775 = vsel %vm1743, %v1742, %v1005
        %vm1776 = vcmask 130048
        %v1777 = vsel %vm1776, %v1744, %v1071
        %v1778 = vsel %vm1776, %v1745, %v1073
        %v1779 = vsel %vm1776, %v1746, %v1075
        %v1780 = vsel %vm1776, %v1747, %v1077
        %v1781 = vsel %vm1776, %v1748, %v1079
        %v1782 = vsel %vm1776, %v1749, %v1081
        %v1783 = vsel %vm1776, %v1750, %v1083
        %v1784 = vsel %vm1776, %v1751, %v1085
        %v1785 = vsel %vm1776, %v1752, %v1087
        %v1786 = vsel %vm1776, %v1753, %v1089
        %v1787 = vsel %vm1776, %v1754, %v1091
        %v1788 = vsel %vm1776, %v1755, %v1093
        %v1789 = vsel %vm1776, %v1756, %v1095
        %v1790 = vsel %vm1776, %v1757, %v1097
        %v1791 = vsel %vm1776, %v1758, %v1099
        %v1792 = vsel %vm1776, %v1759, %v1101
        %v1793 = vsel %vm1776, %v1760, %v1103
        %v1794 = vsel %vm1776, %v1761, %v1105
        %v1795 = vsel %vm1776, %v1762, %v1107
        %v1796 = vsel %vm1776, %v1763, %v1109
        %v1797 = vsel %vm1776, %v1764, %v1111
        %v1798 = vsel %vm1776, %v1765, %v1113
        %v1799 = vsel %vm1776, %v1766, %v1115
        %v1800 = vsel %vm1776, %v1767, %v1117
        %v1801 = vsel %vm1776, %v1768, %v1119
        %v1802 = vsel %vm1776, %v1769, %v1121
        %v1803 = vsel %vm1776, %v1770, %v1123
        %v1804 = vsel %vm1776, %v1771, %v1125
        %v1805 = vsel %vm1776, %v1772, %v1127
        %v1806 = vsel %vm1776, %v1773, %v1129
        %v1807 = vsel %vm1776, %v1774, %v1131
        %v1808 = vsel %vm1776, %v1775, %v1133
        %vm1809 = vcmask 162816
        %v1810 = vsel %vm1809, %v1777, %v1199
        %v1811 = vsel %vm1809, %v1778, %v1201
        %v1812 = vsel %vm1809, %v1779, %v1203
        %v1813 = vsel %vm1809, %v1780, %v1205
        %v1814 = vsel %vm1809, %v1781, %v1207
        %v1815 = vsel %vm1809, %v1782, %v1209
        %v1816 = vsel %vm1809, %v1783, %v1211
        %v1817 = vsel %vm1809, %v1784, %v1213
        %v1818 = vsel %vm1809, %v1785, %v1215
        %v1819 = vsel %vm1809, %v1786, %v1217
        %v1820 = vsel %vm1809, %v1787, %v1219
        %v1821 = vsel %vm1809, %v1788, %v1221
        %v1822 = vsel %vm1809, %v1789, %v1223
        %v1823 = vsel %vm1809, %v1790, %v1225
        %v1824 = vsel %vm1809, %v1791, %v1227
        %v1825 = vsel %vm1809, %v1792, %v1229
        %v1826 = vsel %vm1809, %v1793, %v1231
        %v1827 = vsel %vm1809, %v1794, %v1233
        %v1828 = vsel %vm1809, %v1795, %v1235
        %v1829 = vsel %vm1809, %v1796, %v1237
        %v1830 = vsel %vm1809, %v1797, %v1239
        %v1831 = vsel %vm1809, %v1798, %v1241
        %v1832 = vsel %vm1809, %v1799, %v1243
        %v1833 = vsel %vm1809, %v1800, %v1245
        %v1834 = vsel %vm1809, %v1801, %v1247
        %v1835 = vsel %vm1809, %v1802, %v1249
        %v1836 = vsel %vm1809, %v1803, %v1251
        %v1837 = vsel %vm1809, %v1804, %v1253
        %v1838 = vsel %vm1809, %v1805, %v1255
        %v1839 = vsel %vm1809, %v1806, %v1257
        %v1840 = vsel %vm1809, %v1807, %v1259
        %v1841 = vsel %vm1809, %v1808, %v1261
        %vm1842 = vcmask 195584
        %v1843 = vsel %vm1842, %v1810, %v1327
        %v1844 = vsel %vm1842, %v1811, %v1329
        %v1845 = vsel %vm1842, %v1812, %v1331
        %v1846 = vsel %vm1842, %v1813, %v1333
        %v1847 = vsel %vm1842, %v1814, %v1335
        %v1848 = vsel %vm1842, %v1815, %v1337
        %v1849 = vsel %vm1842, %v1816, %v1339
        %v1850 = vsel %vm1842, %v1817, %v1341
        %v1851 = vsel %vm1842, %v1818, %v1343
        %v1852 = vsel %vm1842, %v1819, %v1345
        %v1853 = vsel %vm1842, %v1820, %v1347
        %v1854 = vsel %vm1842, %v1821, %v1349
        %v1855 = vsel %vm1842, %v1822, %v1351
        %v1856 = vsel %vm1842, %v1823, %v1353
        %v1857 = vsel %vm1842, %v1824, %v1355
        %v1858 = vsel %vm1842, %v1825, %v1357
        %v1859 = vsel %vm1842, %v1826, %v1359
        %v1860 = vsel %vm1842, %v1827, %v1361
        %v1861 = vsel %vm1842, %v1828, %v1363
        %v1862 = vsel %vm1842, %v1829, %v1365
        %v1863 = vsel %vm1842, %v1830, %v1367
        %v1864 = vsel %vm1842, %v1831, %v1369
        %v1865 = vsel %vm1842, %v1832, %v1371
        %v1866 = vsel %vm1842, %v1833, %v1373
        %v1867 = vsel %vm1842, %v1834, %v1375
        %v1868 = vsel %vm1842, %v1835, %v1377
        %v1869 = vsel %vm1842, %v1836, %v1379
        %v1870 = vsel %vm1842, %v1837, %v1381
        %v1871 = vsel %vm1842, %v1838, %v1383
        %v1872 = vsel %vm1842, %v1839, %v1385
        %v1873 = vsel %vm1842, %v1840, %v1387
        %v1874 = vsel %vm1842, %v1841, %v1389
        %vm1875 = vcmask 228352
        %v1876 = vsel %vm1875, %v1843, %v1455
        %v1877 = vsel %vm1875, %v1844, %v1457
        %v1878 = vsel %vm1875, %v1845, %v1459
        %v1879 = vsel %vm1875, %v1846, %v1461
        %v1880 = vsel %vm1875, %v1847, %v1463
        %v1881 = vsel %vm1875, %v1848, %v1465
        %v1882 = vsel %vm1875, %v1849, %v1467
        %v1883 = vsel %vm1875, %v1850, %v1469
        %v1884 = vsel %vm1875, %v1851, %v1471
        %v1885 = vsel %vm1875, %v1852, %v1473
        %v1886 = vsel %vm1875, %v1853, %v1475
        %v1887 = vsel %vm1875, %v1854, %v1477
        %v1888 = vsel %vm1875, %v1855, %v1479
        %v1889 = vsel %vm1875, %v1856, %v1481
        %v1890 = vsel %vm1875, %v1857, %v1483
        %v1891 = vsel %vm1875, %v1858, %v1485
        %v1892 = vsel %vm1875, %v1859, %v1487
        %v1893 = vsel %vm1875, %v1860, %v1489
        %v1894 = vsel %vm1875, %v1861, %v1491
        %v1895 = vsel %vm1875, %v1862, %v1493
        %v1896 = vsel %vm1875, %v1863, %v1495
        %v1897 = vsel %vm1875, %v1864, %v1497
        %v1898 = vsel %vm1875, %v1865, %v1499
        %v1899 = vsel %vm1875, %v1866, %v1501
        %v1900 = vsel %vm1875, %v1867, %v1503
        %v1901 = vsel %vm1875, %v1868, %v1505
        %v1902 = vsel %vm1875, %v1869, %v1507
        %v1903 = vsel %vm1875, %v1870, %v1509
        %v1904 = vsel %vm1875, %v1871, %v1511
        %v1905 = vsel %vm1875, %v1872, %v1513
        %v1906 = vsel %vm1875, %v1873, %v1515
        %v1907 = vsel %vm1875, %v1874, %v1517
        %vm1908 = vcmask 261120
        %v1909 = vsel %vm1908, %v1876, %v1583
        %v1910 = vsel %vm1908, %v1877, %v1585
        %v1911 = vsel %vm1908, %v1878, %v1587
        %v1912 = vsel %vm1908, %v1879, %v1589
        %v1913 = vsel %vm1908, %v1880, %v1591
        %v1914 = vsel %vm1908, %v1881, %v1593
        %v1915 = vsel %vm1908, %v1882, %v1595
        %v1916 = vsel %vm1908, %v1883, %v1597
        %v1917 = vsel %vm1908, %v1884, %v1599
        %v1918 = vsel %vm1908, %v1885, %v1601
        %v1919 = vsel %vm1908, %v1886, %v1603
        %v1920 = vsel %vm1908, %v1887, %v1605
        %v1921 = vsel %vm1908, %v1888, %v1607
        %v1922 = vsel %vm1908, %v1889, %v1609
        %v1923 = vsel %vm1908, %v1890, %v1611
        %v1924 = vsel %vm1908, %v1891, %v1613
        %v1925 = vsel %vm1908, %v1892, %v1615
        %v1926 = vsel %vm1908, %v1893, %v1617
        %v1927 = vsel %vm1908, %v1894, %v1619
        %v1928 = vsel %vm1908, %v1895, %v1621
        %v1929 = vsel %vm1908, %v1896, %v1623
        %v1930 = vsel %vm1908, %v1897, %v1625
        %v1931 = vsel %vm1908, %v1898, %v1627
        %v1932 = vsel %vm1908, %v1899, %v1629
        %v1933 = vsel %vm1908, %v1900, %v1631
        %v1934 = vsel %vm1908, %v1901, %v1633
        %v1935 = vsel %vm1908, %v1902, %v1635
        %v1936 = vsel %vm1908, %v1903, %v1637
        %v1937 = vsel %vm1908, %v1904, %v1639
        %v1938 = vsel %vm1908, %v1905, %v1641
        %v1939 = vsel %vm1908, %v1906, %v1643
        %v1940 = vsel %vm1908, %v1907, %v1645
        %v1941 = vld [vmem:[%s1] sm:$0xff]
        %v1942 = vld [vmem:[%s2] sm:$0xff]
        %1944 = vset.pattern.permute.xlu0 0
        %1945 = vperm.xlu0 %1944, %v1942
        %v1946 = vpop.permute.xlu0 %1945
        %vm1948 = vcmask 293888
        %v1950 = vsel %vm1948, %v1941, 0
        %v1953 = vsel %vm1948, %v1909, 0
        %v1956 = vsel %vm1948, %v1910, 0
        %v1959 = vsel %vm1948, %v1911, 0
        %v1962 = vsel %vm1948, %v1912, 0
        %v1965 = vsel %vm1948, %v1913, 0
        %v1968 = vsel %vm1948, %v1914, 0
        %v1971 = vsel %vm1948, %v1915, 0
        %v1974 = vsel %vm1948, %v1916, 0
        %v1977 = vsel %vm1948, %v1917, 0
        %v1980 = vsel %vm1948, %v1918, 0
        %v1983 = vsel %vm1948, %v1919, 0
        %v1986 = vsel %vm1948, %v1920, 0
        %v1989 = vsel %vm1948, %v1921, 0
        %v1992 = vsel %vm1948, %v1922, 0
        %v1995 = vsel %vm1948, %v1923, 0
        %v1998 = vsel %vm1948, %v1924, 0
        %v2001 = vsel %vm1948, %v1925, 0
        %v2004 = vsel %vm1948, %v1926, 0
        %v2007 = vsel %vm1948, %v1927, 0
        %v2010 = vsel %vm1948, %v1928, 0
        %v2013 = vsel %vm1948, %v1929, 0
        %v2016 = vsel %vm1948, %v1930, 0
        %v2019 = vsel %vm1948, %v1931, 0
        %v2022 = vsel %vm1948, %v1932, 0
        %v2025 = vsel %vm1948, %v1933, 0
        %v2028 = vsel %vm1948, %v1934, 0
        %v2031 = vsel %vm1948, %v1935, 0
        %v2034 = vsel %vm1948, %v1936, 0
        %v2037 = vsel %vm1948, %v1937, 0
        %v2040 = vsel %vm1948, %v1938, 0
        %v2043 = vsel %vm1948, %v1939, 0
        %v2046 = vsel %vm1948, %v1940, 0
        %2048 = vmatprep.subr.mxu0 0.0
        %2049 = vmatpush1.xpose.msra.mxu0 %v1998
        %2050 = vmatprep.subr.mxu0 0.0
        %2051 = vmatpush1.xpose.msra.mxu0 %v1995
        %2052 = vmatprep.subr.mxu0 0.0
        %2053 = vmatpush1.xpose.msra.mxu0 %v1992
        %2054 = vmatprep.subr.mxu0 0.0
        %2055 = vmatpush1.xpose.msra.mxu0 %v1989
        %2056 = vmatprep.subr.mxu0 0.0
        %2057 = vmatpush1.xpose.msra.mxu0 %v1986
        %2058 = vmatprep.subr.mxu0 0.0
        %2059 = vmatpush1.xpose.msra.mxu0 %v1983
        %2060 = vmatprep.subr.mxu0 0.0
        %2061 = vmatpush1.xpose.msra.mxu0 %v1980
        %2062 = vmatprep.subr.mxu0 0.0
        %2063 = vmatpush1.xpose.msra.mxu0 %v1977
        %2064 = vmatprep.subr.mxu0 0.0
        %2065 = vmatpush1.xpose.msra.mxu0 %v1974
        %2066 = vmatprep.subr.mxu0 0.0
        %2067 = vmatpush1.xpose.msra.mxu0 %v1971
        %2068 = vmatprep.subr.mxu0 0.0
        %2069 = vmatpush1.xpose.msra.mxu0 %v1968
        %2070 = vmatprep.subr.mxu0 0.0
        %2071 = vmatpush1.xpose.msra.mxu0 %v1965
        %2072 = vmatprep.subr.mxu0 0.0
        %2073 = vmatpush1.xpose.msra.mxu0 %v1962
        %2074 = vmatprep.subr.mxu0 0.0
        %2075 = vmatpush1.xpose.msra.mxu0 %v1959
        %2076 = vmatprep.subr.mxu0 0.0
        %2077 = vmatpush1.xpose.msra.mxu0 %v1956
        %2078 = vmatprep.subr.mxu0 0.0
        %2079 = vmatpush1.xpose.msra.mxu0 %v1953
        %2080 = vmatprep.subr.mxu0 0.0
        %2081 = vmatpush2.xpose.msra.mxu0 %v2046
        %2082 = vmatprep.subr.mxu0 0.0
        %2083 = vmatpush2.xpose.msra.mxu0 %v2043
        %2084 = vmatprep.subr.mxu0 0.0
        %2085 = vmatpush2.xpose.msra.mxu0 %v2040
        %2086 = vmatprep.subr.mxu0 0.0
        %2087 = vmatpush2.xpose.msra.mxu0 %v2037
        %2088 = vmatprep.subr.mxu0 0.0
        %2089 = vmatpush2.xpose.msra.mxu0 %v2034
        %2090 = vmatprep.subr.mxu0 0.0
        %2091 = vmatpush2.xpose.msra.mxu0 %v2031
        %2092 = vmatprep.subr.mxu0 0.0
        %2093 = vmatpush2.xpose.msra.mxu0 %v2028
        %2094 = vmatprep.subr.mxu0 0.0
        %2095 = vmatpush2.xpose.msra.mxu0 %v2025
        %2096 = vmatprep.subr.mxu0 0.0
        %2097 = vmatpush2.xpose.msra.mxu0 %v2022
        %2098 = vmatprep.subr.mxu0 0.0
        %2099 = vmatpush2.xpose.msra.mxu0 %v2019
        %2100 = vmatprep.subr.mxu0 0.0
        %2101 = vmatpush2.xpose.msra.mxu0 %v2016
        %2102 = vmatprep.subr.mxu0 0.0
        %2103 = vmatpush2.xpose.msra.mxu0 %v2013
        %2104 = vmatprep.subr.mxu0 0.0
        %2105 = vmatpush2.xpose.msra.mxu0 %v2010
        %2106 = vmatprep.subr.mxu0 0.0
        %2107 = vmatpush2.xpose.msra.mxu0 %v2007
        %2108 = vmatprep.subr.mxu0 0.0
        %2109 = vmatpush2.xpose.msra.mxu0 %v2004
        %2110 = vmatprep.subr.mxu0 0.0
        %2111 = vmatpush2.xpose.msra.mxu0 %v2001
        %2112 = vmatprep.mubr.f32.mxu0 0.0
        %2113 = vmatmul.mubr.f32.gmra.mxu0 %v1950
        %v2114 = vpop.f32.mrf.mxu0
        %v2115 = vadd.f32 %v1946, %v2114
        %v2116 = vpop.f32.mrf.mxu0
        %v2117 = vadd.f32 %v1946, %v2116
        %2118 = vdwg.mxu0
        %2119 = vst [vmem:[%s218] sm:$0xff] %v2115
        %2120 = vst [vmem:[%s218 + $0x8] sm:$0xff] %v2117
        %v2121 = vadd.f32 %v2115, %v2117
        %2122 = vadd.xlane.f32.xlu0 %v2121
        %v2123 = vpop.xlane.xlu0 %2122
        %vm2124 = vcmask 7168
        %2125 = vst.msk [vmem:[%s239] sm:$0xff] %vm2124, %v2123
        %v2126 = vmul.f32 %v2115, %v2115
        %v2127 = vmul.f32 %v2117, %v2117
        %v2128 = vadd.f32 %v2126, %v2127
        %2129 = vadd.xlane.f32.xlu0 %v2128
        %v2130 = vpop.xlane.xlu0 %2129
        %2131 = vst.msk [vmem:[%s243] sm:$0xff] %vm2124, %v2130
        %s2132 = sand.u32 %s96, 1
        %s2133 = scalar_lea.sflag [#allocation4], %s2132
        %s2134 = sand.u32 %s96, 1
        %s2135 = smul.addr %s2134, 16
        %s2136 = scalar_lea.vmem [#allocation3], %s2135
        %p2137 = scmp.lt.s32.totalorder %s20, 1
        %s2138 = scalar_select %p2137, %s20, 1
        %s2139 = smul.addr %s2138, 8
        %s2140 = scalar_lea.vmem %s4, %s2139
        %p2141 = scmp.lt.s32.totalorder %s20, 1
        %s2142 = scalar_select %p2141, %s20, 1
        %s2143 = smul.addr %s2142, 8
        %s2144 = scalar_lea.vmem %s5, %s2143
        // Predicated region
        $region33: #{tpu_custom_call.1} parent=31 // pred_check
          %p2145 = pneg %p106
        $region34: #{tpu_custom_call.1} parent=31 // pred_check_branch
          %2147 = sbr.rel (%p2145) target = $region36
        $region35: #{tpu_custom_call.1} parent=31 // pred_region
          %s2149 = ssub.s32 256, 256
          %2150 = vsyncadd %s2133, %s2149
          %s2151 = smul.addr %s20, 2
          %s2152 = smul.addr %s2151, 128
          %s2153 = scalar_lea.hbm %s3, %s2152
          %s2155 = sshll.u32 %s2136, 4
          %s2156 = int_to_ptr.vmem [resolvable:$true] %s2155
          %2158 = dma.vmem_to_hbm [thread:$0]  %s2156, 256, %s2153, %s2133
        $region36: #{tpu_custom_call.1} parent=31 // pred_fallthru
          _
        // Predicated region
        $region37: #{tpu_custom_call.1} parent=31 // pred_check
          %p2159 = pneg %p132
        $region38: #{tpu_custom_call.1} parent=31 // pred_check_branch
          %2161 = sbr.rel (%p2159) target = $region40
        $region39: #{tpu_custom_call.1} parent=31 // pred_region
          _
        $region40: #{tpu_custom_call.1} parent=31 // pred_fallthru
          _
        // Predicated region
        $region41: #{tpu_custom_call.1} parent=31 // pred_check
          %p2162 = pneg %p158
        $region42: #{tpu_custom_call.1} parent=31 // pred_check_branch
          %2164 = sbr.rel (%p2162) target = $region44
        $region43: #{tpu_custom_call.1} parent=31 // pred_region
          _
        $region44: #{tpu_custom_call.1} parent=31 // pred_fallthru
          _
      $region32: #{tpu_custom_call.1} parent=5 // pred_fallthru
        _
      %p2165 = scmp.le.s32.totalorder 2, %s15
      // Predicated region
      $region45: #{tpu_custom_call.1} parent=5 // pred_check
        %p2166 = pneg %p2165
      $region46: #{tpu_custom_call.1} parent=5 // pred_check_branch
        %2168 = sbr.rel (%p2166) target = $region48
      $region47: #{tpu_custom_call.1} parent=5 // pred_region
        %s2169 = ssub.s32 %s15, 2
        // Predicated region
        $region49: #{tpu_custom_call.1} parent=47 // pred_check
          %p2170 = pneg %p112
        $region50: #{tpu_custom_call.1} parent=47 // pred_check_branch
          %2172 = sbr.rel (%p2170) target = $region52
        $region51: #{tpu_custom_call.1} parent=47 // pred_region
          %s2173 = sand.u32 %s97, 1
          %s2174 = scalar_lea.sflag [#allocation4], %s2173
          %s2175 = sand.u32 %s97, 1
          %s2176 = smul.addr %s2175, 16
          %s2177 = scalar_lea.vmem [#allocation3], %s2176
          %2178 = dma.done %s2174, 256
        $region52: #{tpu_custom_call.1} parent=47 // pred_fallthru
          _
        // Predicated region
        $region53: #{tpu_custom_call.1} parent=47 // pred_check
          %p2179 = pneg %p138
        $region54: #{tpu_custom_call.1} parent=47 // pred_check_branch
          %2181 = sbr.rel (%p2179) target = $region56
        $region55: #{tpu_custom_call.1} parent=47 // pred_region
          %p2182 = scmp.lt.s32.totalorder %s21, 1
          %s2183 = scalar_select %p2182, %s21, 1
          %s2184 = smul.addr %s2183, 8
          %s2185 = scalar_lea.vmem %s4, %s2184
        $region56: #{tpu_custom_call.1} parent=47 // pred_fallthru
          _
        // Predicated region
        $region57: #{tpu_custom_call.1} parent=47 // pred_check
          %p2186 = pneg %p164
        $region58: #{tpu_custom_call.1} parent=47 // pred_check_branch
          %2188 = sbr.rel (%p2186) target = $region60
        $region59: #{tpu_custom_call.1} parent=47 // pred_region
          %p2189 = scmp.lt.s32.totalorder %s21, 1
          %s2190 = scalar_select %p2189, %s21, 1
          %s2191 = smul.addr %s2190, 8
          %s2192 = scalar_lea.vmem %s5, %s2191
        $region60: #{tpu_custom_call.1} parent=47 // pred_fallthru
          _
      $region48: #{tpu_custom_call.1} parent=5 // pred_fallthru
        _
    $region6: #{tpu_custom_call.1} parent=1 // loop_footer
      %s19 = sadd.s32 1, %s15
    $region7: #{tpu_custom_call.1} parent=1 // loop_footer_branch
      %14 = sbr.rel target = $region3
    $region8: #{tpu_custom_call.1} parent=1 // loop_exit
      _
    %2193 = vsyncpa [#allocation4], 1
    %s2194 = scalar_lea.sflag [#allocation4], 1
    %2195 = vsyncpa %s2194, 1

</llo_original>
